<compile_context>
chip_gen: v7x
topology: tpu7x:2x2x1
jax: 0.10.0
libtpu: 0.0.40
codegen_flags: <defaults>
</compile_context>

<pallas_src>
import functools

import jax
import jax.numpy as jnp
from jax import lax
from jax.experimental import pallas as pl
from jax.experimental.pallas import tpu as pltpu


# ----------------------------------------------------------------------------
# Small helpers
# ----------------------------------------------------------------------------

def _round_up(x, m):
    return (x + m - 1) // m * m


@functools.lru_cache(maxsize=1)
def _vmem_capacity_bytes():
    """Generation-aware VMEM capacity (64 MiB on v7x, 128 MiB on v5e/v6e)."""
    try:
        info = pltpu.get_tpu_info()
        return int(getattr(info, "vmem_capacity_bytes", 64 * 1024 * 1024))
    except Exception:
        return 64 * 1024 * 1024


# ----------------------------------------------------------------------------
# Generic fused "tap conv" Pallas kernel (covers 3x3 dilated convs + the
# space-to-depth stem conv).
# ----------------------------------------------------------------------------

def _tap_conv_kernel(a_ref, h_ref, w_ref, b_ref, o_ref, *scratch,
                     tap_offsets, relu, fold_k, cin):
    """One (TM, tco) output tile of a shift-and-matmul convolution.

    a_ref : (TM, Cin)        bf16  row tile of the flattened padded activation
    h_ref : (tail_pad, Cin)  bf16  halo rows (the next rows after the tile)
    w_ref : (T*Cin, tco)     bf16  per-tap weights, scale-folded
    b_ref : (1, tco)         f32   folded bias
    o_ref : (TM, tco)              output tile
    """
    tm = o_ref.shape[0]
    xs = scratch[0]                       # (TM + tail_pad, Cin) VMEM window
    xs[:tm, :] = a_ref[...]
    xs[tm:, :] = h_ref[...]

    if fold_k:
        # Pack the taps into K: (TM, T*Cin) im2col slab, one MXU matmul.
        slab = scratch[1]
        for t, off in enumerate(tap_offsets):
            slab[:, t * cin:(t + 1) * cin] = xs[off:off + tm, :]
        acc = jnp.dot(slab[...], w_ref[...],
                      preferred_element_type=jnp.float32)
    else:
        # Cin already fills the MXU K-dim: accumulate T shifted-view matmuls.
        acc = None
        for t, off in enumerate(tap_offsets):
            part = jnp.dot(xs[off:off + tm, :],
                           w_ref[t * cin:(t + 1) * cin, :],
                           preferred_element_type=jnp.float32)
            acc = part if acc is None else acc + part

    r = acc + b_ref[...]
    if relu:
        r = jnp.maximum(r, 0.0)
    o_ref[...] = r.astype(o_ref.dtype)


def _fused_tap_conv(x_ext, w_k, bias, *, tap_offsets, relu, out_rows,
                    out_dtype=jnp.bfloat16):
    """Row-tiled convolution: out[n, r] = sum_t x_ext[n, r + off_t] @ w_k[t].

    x_ext : (N, E, Cin)     activation rows (already spatially padded/aligned)
    w_k   : (T, Cin, Cout)  per-tap weight matrices (BN scale pre-folded)
    bias  : (Cout,)
    Returns (N, out_rows, Cout).
    """
    x_ext = x_ext.astype(jnp.bfloat16)
    N, E, Cin = x_ext.shape
    T, _, Cout = w_k.shape
    KT = T * Cin
    tail = max(tap_offsets)
    tail_pad = max(8, _round_up(tail, 8))
    fold_k = (Cin < 128) and (Cin % 8 == 0)
    tco = 256 if Cout > 256 else Cout
    n_co = Cout // tco

    # Generation-aware VMEM budgeting (v7x: 64 MiB/TC; v5e/v6e: 128 MiB).
    cap = _vmem_capacity_bytes()
    vmem_limit = min(cap * 3 // 4, 100 * 1024 * 1024)
    budget = vmem_limit * 3 // 5
    out_bytes = jnp.dtype(out_dtype).itemsize
    per_row = (Cin * 2 * 2            # activation tile, double-buffered
               + Cin * 2              # VMEM window scratch
               + (KT * 2 if fold_k else 0)   # im2col slab scratch
               + tco * out_bytes * 2  # output tile, double-buffered
               + tco * 4)             # f32 accumulator
    fixed = KT * tco * 2 * 2 + tail_pad * Cin * 2 * 2 + (1 << 20)
    tm = max(budget - fixed, per_row * 256) // per_row
    tm = (tm // 8) * 8
    tm = min(tm, 8192, _round_up(out_rows, 8))
    tm = max(tm, tail_pad, 8)          # halo trick needs TM >= tail_pad

    n_m = -(-out_rows // tm)
    R = n_m * tm
    NT = N * n_m
    L = R + tm
    if E < L:
        xe = jnp.pad(x_ext, ((0, 0), (0, L - E), (0, 0)))
    else:
        xe = x_ext[:, :L, :]

    # Main row tiles (non-overlapping) + small per-tile halo array.
    a2 = xe[:, :R, :].reshape(NT * tm, Cin)
    halo = (xe[:, tm:tm + R, :].reshape(N, n_m, tm, Cin)[:, :, :tail_pad, :]
            .reshape(NT * tail_pad, Cin))
    w2 = w_k.astype(jnp.bfloat16).reshape(KT, Cout)
    b2 = bias.reshape(1, Cout).astype(jnp.float32)

    scratch = [pltpu.VMEM((tm + tail_pad, Cin), jnp.bfloat16)]
    if fold_k:
        scratch.append(pltpu.VMEM((tm, KT), jnp.bfloat16))

    out = pl.pallas_call(
        functools.partial(_tap_conv_kernel, tap_offsets=tuple(tap_offsets),
                          relu=relu, fold_k=fold_k, cin=Cin),
        out_shape=jax.ShapeDtypeStruct((NT * tm, Cout), out_dtype),
        grid_spec=pltpu.PrefetchScalarGridSpec(
            num_scalar_prefetch=0,
            grid=(NT, n_co),
            in_specs=[
                pl.BlockSpec((tm, Cin), lambda t, co: (t, 0)),
                pl.BlockSpec((tail_pad, Cin), lambda t, co: (t, 0)),
                pl.BlockSpec((KT, tco), lambda t, co: (0, co)),
                pl.BlockSpec((1, tco), lambda t, co: (0, co)),
            ],
            out_specs=pl.BlockSpec((tm, tco), lambda t, co: (t, co)),
            scratch_shapes=scratch,
        ),
        compiler_params=pltpu.CompilerParams(
            dimension_semantics=("parallel", "parallel"),
            vmem_limit_bytes=int(vmem_limit),
        ),
    )(a2, halo, w2, b2)

    return out.reshape(N, R, Cout)[:, :out_rows, :]


def conv3x3(x, w, scale, bias, *, dilation=1, relu=True,
            out_dtype=jnp.bfloat16):
    """3x3 conv, stride 1, padding == dilation, fused BN scale/bias (+ReLU)."""
    N, H, W, Cin = x.shape
    Cout = w.shape[-1]
    d = dilation
    Wp = W + 2 * d
    w_eff = (w.astype(jnp.float32)
             * scale.astype(jnp.float32)[None, None, None, :]).reshape(9, Cin, Cout)
    xp = jnp.pad(x.astype(jnp.bfloat16), ((0, 0), (d, d), (d, d), (0, 0)))
    flat = xp.reshape(N, (H + 2 * d) * Wp, Cin)
    taps = tuple(ky * d * Wp + kx * d for ky in range(3) for kx in range(3))
    y = _fused_tap_conv(flat, w_eff, bias, tap_offsets=taps, relu=relu,
                        out_rows=H * Wp, out_dtype=out_dtype)
    return y.reshape(N, H, Wp, Cout)[:, :, :W, :]


def conv_in_apply(p, x):
    """nn.Conv2d(3, 64, 3, stride=2, padding=1) as space-to-depth(2) + 4-tap conv."""
    N, H, W, Cin = x.shape
    Cout = p["w"].shape[-1]
    Ho, Wo = (H + 1) // 2, (W + 1) // 2
    xp = jnp.pad(x.astype(jnp.bfloat16),
                 ((0, 0), (1, 2 * Ho - H + 1), (1, 2 * Wo - W + 1), (0, 0)))
    s2d = xp.reshape(N, Ho + 1, 2, Wo + 1, 2, Cin)
    s2d = s2d.transpose(0, 1, 3, 2, 4, 5).reshape(N, Ho + 1, Wo + 1, 4 * Cin)
    flat = s2d.reshape(N, (Ho + 1) * (Wo + 1), 4 * Cin)

    w = (p["w"].astype(jnp.float32)
         * p["scale"].astype(jnp.float32)[None, None, None, :])
    wpad = jnp.pad(w, ((0, 1), (0, 1), (0, 0), (0, 0)))            # (4,4,Cin,Cout)
    w4 = wpad.reshape(2, 2, 2, 2, Cin, Cout).transpose(0, 2, 1, 3, 4, 5)
    w4 = w4.reshape(4, 4 * Cin, Cout)                              # taps (dy,dx)

    taps = tuple(dy * (Wo + 1) + dx for dy in range(2) for dx in range(2))
    y = _fused_tap_conv(flat, w4, p["bias"], tap_offsets=taps, relu=False,
                        out_rows=Ho * (Wo + 1), out_dtype=jnp.bfloat16)
    return y.reshape(N, Ho, Wo + 1, Cout)[:, :, :Wo, :]


# ----------------------------------------------------------------------------
# Tiled Pallas sigmoid (lane-dense, gridded, parallel)
# ----------------------------------------------------------------------------

def _sigmoid_kernel(x_ref, o_ref):
    o_ref[...] = jax.nn.sigmoid(x_ref[...])


def pallas_sigmoid(x):
    shape = x.shape
    flat = x.reshape(-1)
    lanes = 512
    L = flat.shape[0]
    rows = _round_up(-(-L // lanes), 8)
    tr = min(2048, rows)
    rows = _round_up(rows, tr)
    x2 = jnp.pad(flat, (0, rows * lanes - L)).reshape(rows, lanes)
    out = pl.pallas_call(
        _sigmoid_kernel,
        out_shape=jax.ShapeDtypeStruct((rows, lanes), x.dtype),
        grid_spec=pltpu.PrefetchScalarGridSpec(
            num_scalar_prefetch=0,
            grid=(rows // tr,),
            in_specs=[pl.BlockSpec((tr, lanes), lambda i: (i, 0))],
            out_specs=pl.BlockSpec((tr, lanes), lambda i: (i, 0)),
        ),
        compiler_params=pltpu.CompilerParams(
            dimension_semantics=("parallel",)),
    )(x2)
    return out.reshape(-1)[:L].reshape(shape)


# ----------------------------------------------------------------------------
# Pool / upsample / side-conv building blocks (NHWC) — kept in XLA
# ----------------------------------------------------------------------------
# TODO(synk): MaxPool(ceil_mode), bilinear upsample and the Cout=1 side convs
# stay as XLA ops (reduce_window / einsum / conv) — no benefit from Pallas.

def maxpool2x2_ceil(x):
    N, H, W, C = x.shape
    Ho, Wo = -(-H // 2), -(-W // 2)
    pad_h, pad_w = 2 * Ho - H, 2 * Wo - W
    if pad_h or pad_w:
        x = jnp.pad(x, ((0, 0), (0, pad_h), (0, pad_w), (0, 0)),
                    constant_values=-jnp.inf)
    return lax.reduce_window(x, jnp.array(-jnp.inf, x.dtype), lax.max,
                             (1, 2, 2, 1), (1, 2, 2, 1), "VALID")


def _interp_matrix(in_size, out_size):
    """Row-interp matrix matching F.interpolate(bilinear, align_corners=False)."""
    scale = in_size / out_size
    coord = (jnp.arange(out_size, dtype=jnp.float32) + 0.5) * scale - 0.5
    coord = jnp.maximum(coord, 0.0)
    i0 = jnp.minimum(jnp.floor(coord).astype(jnp.int32), in_size - 1)
    i1 = jnp.minimum(i0 + 1, in_size - 1)
    w1 = jnp.clip(coord - i0.astype(jnp.float32), 0.0, 1.0)
    m = ((1.0 - w1)[:, None] * jax.nn.one_hot(i0, in_size, dtype=jnp.float32)
         + w1[:, None] * jax.nn.one_hot(i1, in_size, dtype=jnp.float32))
    return m  # (out_size, in_size)


def upsample_like(src, tar_h, tar_w):
    """Bilinear resize via two bf16 interpolation matmuls (f32 accumulate)."""
    N, H, W, C = src.shape
    if (H, W) == (tar_h, tar_w):
        return src
    ah = _interp_matrix(H, tar_h).astype(jnp.bfloat16)
    aw = _interp_matrix(W, tar_w).astype(jnp.bfloat16)
    s = src.astype(jnp.bfloat16)
    t = jnp.einsum("oh,nhwc->nowc", ah, s,
                   preferred_element_type=jnp.float32).astype(jnp.bfloat16)
    o = jnp.einsum("pw,nowc->nopc", aw, t,
                   preferred_element_type=jnp.float32)
    return o.astype(src.dtype)


def side_conv_apply(p, x):
    """Cout=1 3x3 side conv — XLA conv (trivial compute, bad Pallas lane density)."""
    w = (p["w"].astype(jnp.float32)
         * p["scale"].astype(jnp.float32)[None, None, None, :])
    y = lax.conv_general_dilated(x.astype(jnp.float32), w,
                                 window_strides=(1, 1),
                                 padding=((1, 1), (1, 1)),
                                 dimension_numbers=("NHWC", "HWIO", "NHWC"))
    return y + p["bias"].reshape(1, 1, 1, -1)


# ----------------------------------------------------------------------------
# Deterministic parameter construction (synthetic weights, no checkpoint)
# ----------------------------------------------------------------------------

def make_rebnconv(key, cin, cout):
    """Conv3x3(+bias) + BatchNorm(eval) + ReLU, BN folded to scale/bias."""
    k = jax.random.split(key, 6)
    w = jax.random.normal(k[0], (3, 3, cin, cout), jnp.float32) / jnp.sqrt(9.0 * cin)
    b = 0.01 * jax.random.normal(k[1], (cout,), jnp.float32)
    gamma = 1.0 + 0.1 * jax.random.normal(k[2], (cout,), jnp.float32)
    beta = 0.1 * jax.random.normal(k[3], (cout,), jnp.float32)
    mean = 0.1 * jax.random.normal(k[4], (cout,), jnp.float32)
    var = 1.0 + 0.1 * jnp.abs(jax.random.normal(k[5], (cout,), jnp.float32))
    scale = gamma / jnp.sqrt(var + 1e-5)
    bias = (b - mean) * scale + beta
    return {"w": w, "scale": scale, "bias": bias}


def make_plain_conv(key, cin, cout):
    k = jax.random.split(key, 2)
    w = jax.random.normal(k[0], (3, 3, cin, cout), jnp.float32) / jnp.sqrt(9.0 * cin)
    b = 0.01 * jax.random.normal(k[1], (cout,), jnp.float32)
    return {"w": w, "scale": jnp.ones((cout,), jnp.float32), "bias": b}


def make_rsu(key, L, in_ch, mid_ch, out_ch):
    ks = jax.random.split(key, 2 * L)
    p = {"cin": make_rebnconv(ks[0], in_ch, out_ch)}
    enc = [make_rebnconv(ks[1], out_ch, mid_ch)]
    for i in range(2, L + 1):
        enc.append(make_rebnconv(ks[i], mid_ch, mid_ch))
    dec = []
    for j in range(1, L):
        co = out_ch if j == 1 else mid_ch
        dec.append(make_rebnconv(ks[L + j], 2 * mid_ch, co))
    p["enc"] = enc
    p["dec"] = dec
    return p


def make_rsu4f(key, in_ch, mid_ch, out_ch):
    ks = jax.random.split(key, 8)
    return {
        "cin": make_rebnconv(ks[0], in_ch, out_ch),
        "c1": make_rebnconv(ks[1], out_ch, mid_ch),
        "c2": make_rebnconv(ks[2], mid_ch, mid_ch),
        "c3": make_rebnconv(ks[3], mid_ch, mid_ch),
        "c4": make_rebnconv(ks[4], mid_ch, mid_ch),
        "c3d": make_rebnconv(ks[5], 2 * mid_ch, mid_ch),
        "c2d": make_rebnconv(ks[6], 2 * mid_ch, mid_ch),
        "c1d": make_rebnconv(ks[7], 2 * mid_ch, out_ch),
    }


def build_params(key):
    ks = iter(jax.random.split(key, 32))
    p = {}
    p["conv_in"] = make_plain_conv(next(ks), 3, 64)      # stride 2, pad 1
    p["stage1"] = make_rsu(next(ks), 7, 64, 32, 64)
    p["stage2"] = make_rsu(next(ks), 6, 64, 32, 128)
    p["stage3"] = make_rsu(next(ks), 5, 128, 64, 256)
    p["stage4"] = make_rsu(next(ks), 4, 256, 128, 512)
    p["stage5"] = make_rsu4f(next(ks), 512, 256, 512)
    p["stage6"] = make_rsu4f(next(ks), 512, 256, 512)
    p["stage5d"] = make_rsu4f(next(ks), 1024, 256, 512)
    p["stage4d"] = make_rsu(next(ks), 4, 1024, 128, 256)
    p["stage3d"] = make_rsu(next(ks), 5, 512, 64, 128)
    p["stage2d"] = make_rsu(next(ks), 6, 256, 32, 64)
    p["stage1d"] = make_rsu(next(ks), 7, 128, 16, 64)
    p["side1"] = make_plain_conv(next(ks), 64, 1)
    p["side2"] = make_plain_conv(next(ks), 64, 1)
    p["side3"] = make_plain_conv(next(ks), 128, 1)
    p["side4"] = make_plain_conv(next(ks), 256, 1)
    p["side5"] = make_plain_conv(next(ks), 512, 1)
    p["side6"] = make_plain_conv(next(ks), 512, 1)
    return p


# ----------------------------------------------------------------------------
# RSU blocks / ORMBG forward (NHWC internally, bf16 activations)
# ----------------------------------------------------------------------------

def rebnconv_apply(p, x, dilation=1):
    return conv3x3(x, p["w"], p["scale"], p["bias"],
                   dilation=dilation, relu=True, out_dtype=jnp.bfloat16)


def rsu_apply(p, x, L):
    """Generic RSU-L (RSU7/6/5/4)."""
    hxin = rebnconv_apply(p["cin"], x)
    h = [None] * (L + 1)
    h[1] = rebnconv_apply(p["enc"][0], hxin)
    cur = h[1]
    for i in range(2, L):
        cur = maxpool2x2_ceil(cur)
        h[i] = rebnconv_apply(p["enc"][i - 1], cur)
        cur = h[i]
    h[L] = rebnconv_apply(p["enc"][L - 1], h[L - 1], dilation=2)

    d = rebnconv_apply(p["dec"][L - 2], jnp.concatenate([h[L], h[L - 1]], -1))
    for i in range(L - 2, 0, -1):
        dup = upsample_like(d, h[i].shape[1], h[i].shape[2])
        d = rebnconv_apply(p["dec"][i - 1], jnp.concatenate([dup, h[i]], -1))
    return d + hxin


def rsu4f_apply(p, x):
    hxin = rebnconv_apply(p["cin"], x)
    hx1 = rebnconv_apply(p["c1"], hxin, dilation=1)
    hx2 = rebnconv_apply(p["c2"], hx1, dilation=2)
    hx3 = rebnconv_apply(p["c3"], hx2, dilation=4)
    hx4 = rebnconv_apply(p["c4"], hx3, dilation=8)
    hx3d = rebnconv_apply(p["c3d"], jnp.concatenate([hx4, hx3], -1), dilation=4)
    hx2d = rebnconv_apply(p["c2d"], jnp.concatenate([hx3d, hx2], -1), dilation=2)
    hx1d = rebnconv_apply(p["c1d"], jnp.concatenate([hx2d, hx1], -1), dilation=1)
    return hx1d + hxin


def ormbg_forward(p, x_nchw):
    x = jnp.transpose(x_nchw, (0, 2, 3, 1)).astype(jnp.float32)  # NHWC
    H0, W0 = x.shape[1], x.shape[2]

    hxin = conv_in_apply(p["conv_in"], x)
    # note: self.pool_in is defined in the PyTorch module but unused in forward.

    hx1 = rsu_apply(p["stage1"], hxin, 7)
    hx = maxpool2x2_ceil(hx1)
    hx2 = rsu_apply(p["stage2"], hx, 6)
    hx = maxpool2x2_ceil(hx2)
    hx3 = rsu_apply(p["stage3"], hx, 5)
    hx = maxpool2x2_ceil(hx3)
    hx4 = rsu_apply(p["stage4"], hx, 4)
    hx = maxpool2x2_ceil(hx4)
    hx5 = rsu4f_apply(p["stage5"], hx)
    hx = maxpool2x2_ceil(hx5)
    hx6 = rsu4f_apply(p["stage6"], hx)

    hx6up = upsample_like(hx6, hx5.shape[1], hx5.shape[2])
    hx5d = rsu4f_apply(p["stage5d"], jnp.concatenate([hx6up, hx5], -1))
    hx5dup = upsample_like(hx5d, hx4.shape[1], hx4.shape[2])
    hx4d = rsu_apply(p["stage4d"], jnp.concatenate([hx5dup, hx4], -1), 4)
    hx4dup = upsample_like(hx4d, hx3.shape[1], hx3.shape[2])
    hx3d = rsu_apply(p["stage3d"], jnp.concatenate([hx4dup, hx3], -1), 5)
    hx3dup = upsample_like(hx3d, hx2.shape[1], hx2.shape[2])
    hx2d = rsu_apply(p["stage2d"], jnp.concatenate([hx3dup, hx2], -1), 6)
    hx2dup = upsample_like(hx2d, hx1.shape[1], hx1.shape[2])
    hx1d = rsu_apply(p["stage1d"], jnp.concatenate([hx2dup, hx1], -1), 7)

    def side(name, feat):
        d = side_conv_apply(p[name], feat)         # f32, XLA conv (Cout=1)
        d = upsample_like(d, H0, W0)               # input resolution
        return pallas_sigmoid(d)                   # tiled Pallas sigmoid

    d1 = side("side1", hx1d)
    d2 = side("side2", hx2d)
    d3 = side("side3", hx3d)
    d4 = side("side4", hx4d)
    d5 = side("side5", hx5d)
    d6 = side("side6", hx6)

    def to_nchw(t):
        return jnp.transpose(t, (0, 3, 1, 2))

    sides = [to_nchw(t) for t in (d1, d2, d3, d4, d5, d6)]
    feats = [to_nchw(t.astype(jnp.float32))
             for t in (hx1d, hx2d, hx3d, hx4d, hx5d, hx6)]
    return sides, feats


# ----------------------------------------------------------------------------
# Main
# ----------------------------------------------------------------------------

if __name__ == "__main__":
    key = jax.random.PRNGKey(0)
    pkey, xkey = jax.random.split(key)

    params = build_params(pkey)
    x = jax.random.normal(xkey, (2, 3, 32, 32), jnp.float32)  # NCHW input

    sides, feats = ormbg_forward(params, x)
    jax.block_until_ready((sides, feats))

    assert all(s.shape == (2, 1, 32, 32) for s in sides)
    assert feats[0].shape == (2, 64, 16, 16)
    assert feats[1].shape == (2, 64, 8, 8)
    assert feats[2].shape == (2, 128, 4, 4)
    assert feats[3].shape == (2, 256, 2, 2)
    assert feats[4].shape == (2, 512, 1, 1)
    assert feats[5].shape == (2, 512, 1, 1)
    assert all(bool(jnp.all(jnp.isfinite(s))) for s in sides)

    print("KERNEL_OK")
</pallas_src>

<mosaic_0001>
module attributes {stable_mosaic.version = 11 : i64} {
  func.func @_tap_conv_kernel(%arg0: i32, %arg1: i32, %arg2: memref<272x12xbf16, #tpu.memory_space<vmem>>, %arg3: memref<24x12xbf16, #tpu.memory_space<vmem>>, %arg4: memref<48x64xbf16, #tpu.memory_space<vmem>>, %arg5: memref<1x64xf32, #tpu.memory_space<vmem>>, %arg6: memref<272x64xbf16, #tpu.memory_space<vmem>>, %arg7: memref<296x12xbf16, #tpu.memory_space<vmem>>) attributes {dimension_semantics = [#tpu.dimension_semantics<parallel>, #tpu.dimension_semantics<parallel>], iteration_bounds = array<i64: 2, 1>, scalar_prefetch = 0 : i64, scratch_operands = 1 : i64, tpu.core_type = #tpu.core_type<tc>, window_params = [{transform_indices = @transform_0, window_bounds = array<i64: 272, 12>}, {transform_indices = @transform_1, window_bounds = array<i64: 24, 12>}, {transform_indices = @transform_2, window_bounds = array<i64: 48, 64>}, {transform_indices = @transform_3, window_bounds = array<i64: 1, 64>}, {transform_indices = @transform_4, window_bounds = array<i64: 272, 64>}]} {
    %c0 = arith.constant 0 : index
    %c0_0 = arith.constant 0 : index
    %0 = vector.load %arg2[%c0, %c0_0] : memref<272x12xbf16, #tpu.memory_space<vmem>>, vector<272x12xbf16>
    %c0_1 = arith.constant 0 : index
    %c0_2 = arith.constant 0 : index
    %1 = vector.load %arg7[%c0_1, %c0_2] : memref<296x12xbf16, #tpu.memory_space<vmem>>, vector<272x12xbf16>
    tpu.vector_store %arg7[%c0_1, %c0_2], %0 {strides = array<i32>} : memref<296x12xbf16, #tpu.memory_space<vmem>>, vector<272x12xbf16>,
    %c0_3 = arith.constant 0 : index
    %c0_4 = arith.constant 0 : index
    %2 = vector.load %arg3[%c0_3, %c0_4] : memref<24x12xbf16, #tpu.memory_space<vmem>>, vector<24x12xbf16>
    %c272 = arith.constant 272 : index
    %c0_5 = arith.constant 0 : index
    %3 = vector.load %arg7[%c272, %c0_5] : memref<296x12xbf16, #tpu.memory_space<vmem>>, vector<24x12xbf16>
    tpu.vector_store %arg7[%c272, %c0_5], %2 {strides = array<i32>} : memref<296x12xbf16, #tpu.memory_space<vmem>>, vector<24x12xbf16>,
    %c0_6 = arith.constant 0 : index
    %c0_7 = arith.constant 0 : index
    %4 = vector.load %arg7[%c0_6, %c0_7] : memref<296x12xbf16, #tpu.memory_space<vmem>>, vector<272x12xbf16>
    %c0_8 = arith.constant 0 : index
    %c0_9 = arith.constant 0 : index
    %5 = vector.load %arg4[%c0_8, %c0_9] : memref<48x64xbf16, #tpu.memory_space<vmem>>, vector<12x64xbf16>
    %cst = arith.constant dense<0.000000e+00> : vector<272x64xf32>
    %6 = tpu.matmul %4, %5, %cst {dimension_numbers = #tpu.dot_dimension_numbers<[1], [0], [0], [1], [0, 0, 1, 1], [], []>} : vector<272x12xbf16>, vector<12x64xbf16>, vector<272x64xf32> -> vector<272x64xf32>
    %c1 = arith.constant 1 : index
    %c0_10 = arith.constant 0 : index
    %7 = vector.load %arg7[%c1, %c0_10] : memref<296x12xbf16, #tpu.memory_space<vmem>>, vector<272x12xbf16>
    %c12 = arith.constant 12 : index
    %c0_11 = arith.constant 0 : index
    %8 = vector.load %arg4[%c12, %c0_11] : memref<48x64xbf16, #tpu.memory_space<vmem>>, vector<12x64xbf16>
    %cst_12 = arith.constant dense<0.000000e+00> : vector<272x64xf32>
    %9 = tpu.matmul %7, %8, %cst_12 {dimension_numbers = #tpu.dot_dimension_numbers<[1], [0], [0], [1], [0, 0, 1, 1], [], []>} : vector<272x12xbf16>, vector<12x64xbf16>, vector<272x64xf32> -> vector<272x64xf32>
    %10 = arith.addf %6, %9 : vector<272x64xf32>
    %c17 = arith.constant 17 : index
    %c0_13 = arith.constant 0 : index
    %11 = vector.load %arg7[%c17, %c0_13] : memref<296x12xbf16, #tpu.memory_space<vmem>>, vector<272x12xbf16>
    %c24 = arith.constant 24 : index
    %c0_14 = arith.constant 0 : index
    %12 = vector.load %arg4[%c24, %c0_14] : memref<48x64xbf16, #tpu.memory_space<vmem>>, vector<12x64xbf16>
    %cst_15 = arith.constant dense<0.000000e+00> : vector<272x64xf32>
    %13 = tpu.matmul %11, %12, %cst_15 {dimension_numbers = #tpu.dot_dimension_numbers<[1], [0], [0], [1], [0, 0, 1, 1], [], []>} : vector<272x12xbf16>, vector<12x64xbf16>, vector<272x64xf32> -> vector<272x64xf32>
    %14 = arith.addf %10, %13 : vector<272x64xf32>
    %c18 = arith.constant 18 : index
    %c0_16 = arith.constant 0 : index
    %15 = vector.load %arg7[%c18, %c0_16] : memref<296x12xbf16, #tpu.memory_space<vmem>>, vector<272x12xbf16>
    %c36 = arith.constant 36 : index
    %c0_17 = arith.constant 0 : index
    %16 = vector.load %arg4[%c36, %c0_17] : memref<48x64xbf16, #tpu.memory_space<vmem>>, vector<12x64xbf16>
    %cst_18 = arith.constant dense<0.000000e+00> : vector<272x64xf32>
    %17 = tpu.matmul %15, %16, %cst_18 {dimension_numbers = #tpu.dot_dimension_numbers<[1], [0], [0], [1], [0, 0, 1, 1], [], []>} : vector<272x12xbf16>, vector<12x64xbf16>, vector<272x64xf32> -> vector<272x64xf32>
    %18 = arith.addf %14, %17 : vector<272x64xf32>
    %c0_19 = arith.constant 0 : index
    %c0_20 = arith.constant 0 : index
    %19 = vector.load %arg5[%c0_19, %c0_20] : memref<1x64xf32, #tpu.memory_space<vmem>>, vector<1x64xf32>
    %20 = vector.broadcast %19 : vector<1x64xf32> to vector<272x64xf32>
    %21 = arith.addf %18, %20 : vector<272x64xf32>
    %22 = arith.truncf %21 : vector<272x64xf32> to vector<272x64xbf16>
    %c0_21 = arith.constant 0 : index
    %c0_22 = arith.constant 0 : index
    %23 = vector.load %arg6[%c0_21, %c0_22] : memref<272x64xbf16, #tpu.memory_space<vmem>>, vector<272x64xbf16>
    tpu.vector_store %arg6[%c0_21, %c0_22], %22 {strides = array<i32>} : memref<272x64xbf16, #tpu.memory_space<vmem>>, vector<272x64xbf16>,
    return
  }
  func.func @transform_0(%arg0: i32, %arg1: i32) -> (i32, i32) {
    %c0_i32 = arith.constant 0 : i32
    %c0_i32_0 = arith.constant 0 : i32
    return %arg0, %c0_i32 : i32, i32
  }
  func.func @transform_1(%arg0: i32, %arg1: i32) -> (i32, i32) {
    %c0_i32 = arith.constant 0 : i32
    %c0_i32_0 = arith.constant 0 : i32
    return %arg0, %c0_i32 : i32, i32
  }
  func.func @transform_2(%arg0: i32, %arg1: i32) -> (i32, i32) {
    %c0_i32 = arith.constant 0 : i32
    %c0_i32_0 = arith.constant 0 : i32
    return %c0_i32, %arg1 : i32, i32
  }
  func.func @transform_3(%arg0: i32, %arg1: i32) -> (i32, i32) {
    %c0_i32 = arith.constant 0 : i32
    %c0_i32_0 = arith.constant 0 : i32
    return %c0_i32, %arg1 : i32, i32
  }
  func.func @transform_4(%arg0: i32, %arg1: i32) -> (i32, i32) {
    %c0_i32 = arith.constant 0 : i32
    return %arg0, %arg1 : i32, i32
  }
}

</mosaic_0001>

<llo_original>
// kernel: tpu_custom_call.1
$region0: #{tpu_custom_call.1}
  #allocation0 [shape = 'u32[]', space=smem, size = 0x4, offset = 0x4, fixed_abs, tag = 'smem constant byte address 0x4 - core index']
  #allocation1 [shape = 'u32[144,128]{1,0:T(1,128)}', space=vmem, size = 0x12000, scoped, tag = 'internal scratch']
  #allocation2 [shape = 'bf16[296,12]{1,0:T(8,128)(2,1)}', space=vmem, size = 0x12800, scoped, tag = 'scratch operand']
  %s0 = inlined_call_operand.vmem [shape: bf16[544,12], index: 0, kind: input, shape index: {}]
  %s1 = inlined_call_operand.vmem [shape: bf16[48,12], index: 1, kind: input, shape index: {}]
  %s2 = inlined_call_operand.vmem [shape: bf16[48,64], index: 2, kind: input, shape index: {}]
  %s3 = inlined_call_operand.vmem [shape: f32[1,64], index: 3, kind: input, shape index: {}]
  %s4 = inlined_call_operand.vmem [shape: bf16[544,64], index: 4, kind: output, shape index: {}]
  %s5 = sld [smem:[#allocation0]]
  $region49: #{tpu_custom_call.1} parent=0
    _
  %s7 = ssub.s32 1, %s5
  %s8 = scalar_select 0, %s7, %s5
  loop: start=0, step=1, limit=4
  $region2: #{tpu_custom_call.1} parent=0 // loop_pre_header
    _
  $region3: #{tpu_custom_call.1} parent=0 // loop_header
    %s10 = sphi 0, %s14
    %p11 = scmp.ge.s32.totalorder %s10, 4
    %s17 = sphi 0, %s29
    %s18 = sphi 0, %s25
    %s19 = sphi 0, %s17
    %s20 = sphi 0, %s18
    %s21 = sphi 0, %s19
    %s22 = sphi 0, %s20
    %s32 = sphi 0, %s34
    %s35 = sphi 0, %s32
    %s36 = sphi 0, %s35
    %s52 = sphi 0, %s36
    %s58 = sphi 0, %s60
    %s61 = sphi 0, %s58
    %s62 = sphi 0, %s61
    %s78 = sphi 0, %s62
    %s84 = sphi 0, %s86
    %s87 = sphi 0, %s84
    %s88 = sphi 0, %s87
    %s104 = sphi 0, %s88
    %s110 = sphi 0, %s112
    %s113 = sphi 0, %s110
    %s114 = sphi 0, %s113
    %s130 = sphi 0, %s114
    %s138 = sphi 0, %s140
    %s141 = sphi 0, %s138
    %s142 = sphi 0, %s141
    %s158 = sphi 0, %s142
  $region4: #{tpu_custom_call.1} parent=0 // loop_header_branch
    %13 = sbr.rel (%p11) target = $region8
  $region5: #{tpu_custom_call.1} parent=0 // loop_body
    %s15 = ssub.s32 %s10, 1
    %s16 = ssub.s32 %s10, 2
    %s23 = sadd.s32 1, %s18
    %p24 = scmp.ge.s32.totalorder %s23, 1
    %s25 = scalar_select %p24, 0, %s23
    %s26 = sadd.s32 1, %s17
    %s27 = scalar_select %p24, %s26, %s17
    %p28 = scmp.ge.s32.totalorder %s27, 2
    %s29 = scalar_select %p28, 0, %s27
    %s30 = ssub.s32 %s17, %s29
    %p31 = scmp.eq.s32.totalorder %s30, 0
    %s33 = sadd.s32 %s32, 1
    %s34 = scalar_select %p31, %s32, %s33
    %p37 = pneg %p31
    %p38 = scmp.eq.s32.totalorder %s10, 1
    %p39 = por %p37, %p38
    %p40 = scmp.ne.s32.totalorder %s32, %s35
    %p41 = scmp.eq.s32.totalorder %s10, 0
    %p42 = por %p40, %p41
    %p43 = scmp.ne.s32.totalorder %s32, %s35
    %p44 = scmp.eq.s32.totalorder %s15, 1
    %p45 = por %p43, %p44
    %p46 = scmp.ne.s32.totalorder %s35, %s36
    %p47 = scmp.eq.s32.totalorder %s15, 0
    %p48 = por %p46, %p47
    %p49 = scmp.ne.s32.totalorder %s35, %s36
    %p50 = scmp.eq.s32.totalorder %s16, 1
    %p51 = por %p49, %p50
    %p53 = scmp.ne.s32.totalorder %s36, %s52
    %p54 = scmp.eq.s32.totalorder %s16, 0
    %p55 = por %p53, %p54
    %s56 = ssub.s32 %s17, %s29
    %p57 = scmp.eq.s32.totalorder %s56, 0
    %s59 = sadd.s32 %s58, 1
    %s60 = scalar_select %p57, %s58, %s59
    %p63 = pneg %p57
    %p64 = scmp.eq.s32.totalorder %s10, 1
    %p65 = por %p63, %p64
    %p66 = scmp.ne.s32.totalorder %s58, %s61
    %p67 = scmp.eq.s32.totalorder %s10, 0
    %p68 = por %p66, %p67
    %p69 = scmp.ne.s32.totalorder %s58, %s61
    %p70 = scmp.eq.s32.totalorder %s15, 1
    %p71 = por %p69, %p70
    %p72 = scmp.ne.s32.totalorder %s61, %s62
    %p73 = scmp.eq.s32.totalorder %s15, 0
    %p74 = por %p72, %p73
    %p75 = scmp.ne.s32.totalorder %s61, %s62
    %p76 = scmp.eq.s32.totalorder %s16, 1
    %p77 = por %p75, %p76
    %p79 = scmp.ne.s32.totalorder %s62, %s78
    %p80 = scmp.eq.s32.totalorder %s16, 0
    %p81 = por %p79, %p80
    %s82 = ssub.s32 %s18, %s25
    %p83 = scmp.eq.s32.totalorder %s82, 0
    %s85 = sadd.s32 %s84, 1
    %s86 = scalar_select %p83, %s84, %s85
    %p89 = pneg %p83
    %p90 = scmp.eq.s32.totalorder %s10, 1
    %p91 = por %p89, %p90
    %p92 = scmp.ne.s32.totalorder %s84, %s87
    %p93 = scmp.eq.s32.totalorder %s10, 0
    %p94 = por %p92, %p93
    %p95 = scmp.ne.s32.totalorder %s84, %s87
    %p96 = scmp.eq.s32.totalorder %s15, 1
    %p97 = por %p95, %p96
    %p98 = scmp.ne.s32.totalorder %s87, %s88
    %p99 = scmp.eq.s32.totalorder %s15, 0
    %p100 = por %p98, %p99
    %p101 = scmp.ne.s32.totalorder %s87, %s88
    %p102 = scmp.eq.s32.totalorder %s16, 1
    %p103 = por %p101, %p102
    %p105 = scmp.ne.s32.totalorder %s88, %s104
    %p106 = scmp.eq.s32.totalorder %s16, 0
    %p107 = por %p105, %p106
    %s108 = ssub.s32 %s18, %s25
    %p109 = scmp.eq.s32.totalorder %s108, 0
    %s111 = sadd.s32 %s110, 1
    %s112 = scalar_select %p109, %s110, %s111
    %p115 = pneg %p109
    %p116 = scmp.eq.s32.totalorder %s10, 1
    %p117 = por %p115, %p116
    %p118 = scmp.ne.s32.totalorder %s110, %s113
    %p119 = scmp.eq.s32.totalorder %s10, 0
    %p120 = por %p118, %p119
    %p121 = scmp.ne.s32.totalorder %s110, %s113
    %p122 = scmp.eq.s32.totalorder %s15, 1
    %p123 = por %p121, %p122
    %p124 = scmp.ne.s32.totalorder %s113, %s114
    %p125 = scmp.eq.s32.totalorder %s15, 0
    %p126 = por %p124, %p125
    %p127 = scmp.ne.s32.totalorder %s113, %s114
    %p128 = scmp.eq.s32.totalorder %s16, 1
    %p129 = por %p127, %p128
    %p131 = scmp.ne.s32.totalorder %s114, %s130
    %p132 = scmp.eq.s32.totalorder %s16, 0
    %p133 = por %p131, %p132
    %s134 = ssub.s32 %s17, %s29
    %s135 = ssub.s32 %s18, %s25
    %s136 = sor.u32 %s134, %s135
    %p137 = scmp.eq.s32.totalorder %s136, 0
    %s139 = sadd.s32 %s138, 1
    %s140 = scalar_select %p137, %s138, %s139
    %p143 = pneg %p137
    %p144 = scmp.eq.s32.totalorder %s10, 1
    %p145 = por %p143, %p144
    %p146 = scmp.ne.s32.totalorder %s138, %s141
    %p147 = scmp.eq.s32.totalorder %s10, 0
    %p148 = por %p146, %p147
    %p149 = scmp.ne.s32.totalorder %s138, %s141
    %p150 = scmp.eq.s32.totalorder %s15, 1
    %p151 = por %p149, %p150
    %p152 = scmp.ne.s32.totalorder %s141, %s142
    %p153 = scmp.eq.s32.totalorder %s15, 0
    %p154 = por %p152, %p153
    %p155 = scmp.ne.s32.totalorder %s141, %s142
    %p156 = scmp.eq.s32.totalorder %s16, 1
    %p157 = por %p155, %p156
    %p159 = scmp.ne.s32.totalorder %s142, %s158
    %p160 = scmp.eq.s32.totalorder %s16, 0
    %p161 = por %p159, %p160
    %p162 = scmp.le.s32.totalorder 1, %s10
    %p163 = scmp.lt.s32.totalorder %s10, 3
    %p164 = pnand %p162, %p163
    %p165 = pneg %p164
    // Predicated region
    $region9: #{tpu_custom_call.1} parent=5 // pred_check
      _
    $region10: #{tpu_custom_call.1} parent=5 // pred_check_branch
      %167 = sbr.rel (%p164) target = $region12
    $region11: #{tpu_custom_call.1} parent=5 // pred_region
      %s168 = ssub.s32 %s10, 1
      // Predicated region
      $region13: #{tpu_custom_call.1} parent=11 // pred_check
        %p169 = pneg %p100
      $region14: #{tpu_custom_call.1} parent=11 // pred_check_branch
        %171 = sbr.rel (%p169) target = $region16
      $region15: #{tpu_custom_call.1} parent=11 // pred_region
        %p172 = scmp.lt.s32.totalorder %s20, 0
        %s173 = scalar_select %p172, %s20, 0
        %s174 = smul.addr %s173, 4
        %s175 = scalar_lea.vmem %s2, %s174
      $region16: #{tpu_custom_call.1} parent=11 // pred_fallthru
        _
      // Predicated region
      $region17: #{tpu_custom_call.1} parent=11 // pred_check
        %p176 = pneg %p126
      $region18: #{tpu_custom_call.1} parent=11 // pred_check_branch
        %178 = sbr.rel (%p176) target = $region20
      $region19: #{tpu_custom_call.1} parent=11 // pred_region
        %p179 = scmp.lt.s32.totalorder %s20, 0
        %s180 = scalar_select %p179, %s20, 0
        %s181 = scalar_lea.vmem %s3, %s180
      $region20: #{tpu_custom_call.1} parent=11 // pred_fallthru
        _
    $region12: #{tpu_custom_call.1} parent=5 // pred_fallthru
      _
    %p182 = scmp.lt.s32.totalorder %s10, 2
    // Predicated region
    $region21: #{tpu_custom_call.1} parent=5 // pred_check
      %p183 = pneg %p182
    $region22: #{tpu_custom_call.1} parent=5 // pred_check_branch
      %185 = sbr.rel (%p183) target = $region24
    $region23: #{tpu_custom_call.1} parent=5 // pred_region
      // Predicated region
      $region25: #{tpu_custom_call.1} parent=23 // pred_check
        %p186 = pneg %p42
      $region26: #{tpu_custom_call.1} parent=23 // pred_check_branch
        %188 = sbr.rel (%p186) target = $region28
      $region27: #{tpu_custom_call.1} parent=23 // pred_region
        %s189 = smul.u32 34, %s17
        %p190 = scmp.lt.s32.totalorder %s189, 67
        %s191 = scalar_select %p190, %s189, 67
        %s192 = smul.addr %s191, 4
        %s193 = scalar_lea.vmem %s0, %s192
        %s194 = smul.u32 34, %s17
      $region28: #{tpu_custom_call.1} parent=23 // pred_fallthru
        _
      // Predicated region
      $region29: #{tpu_custom_call.1} parent=23 // pred_check
        %p195 = pneg %p68
      $region30: #{tpu_custom_call.1} parent=23 // pred_check_branch
        %197 = sbr.rel (%p195) target = $region32
      $region31: #{tpu_custom_call.1} parent=23 // pred_region
        %s198 = smul.u32 3, %s17
        %p199 = scmp.lt.s32.totalorder %s198, 5
        %s200 = scalar_select %p199, %s198, 5
        %s201 = smul.addr %s200, 4
        %s202 = scalar_lea.vmem %s1, %s201
        %s203 = smul.u32 3, %s17
      $region32: #{tpu_custom_call.1} parent=23 // pred_fallthru
        _
    $region24: #{tpu_custom_call.1} parent=5 // pred_fallthru
      _
    %p204 = scmp.le.s32.totalorder 1, %s10
    %p205 = scmp.lt.s32.totalorder %s10, 3
    %p206 = pnand %p204, %p205
    %p207 = pneg %p206
    // Predicated region
    $region33: #{tpu_custom_call.1} parent=5 // pred_check
      _
    $region34: #{tpu_custom_call.1} parent=5 // pred_check_branch
      %209 = sbr.rel (%p206) target = $region36
    $region35: #{tpu_custom_call.1} parent=5 // pred_region
      %s210 = ssub.s32 %s10, 1
      %s211 = smul.u32 34, %s19
      %p212 = scmp.lt.s32.totalorder %s211, 67
      %s213 = scalar_select %p212, %s211, 67
      %s214 = smul.addr %s213, 4
      %s215 = scalar_lea.vmem %s0, %s214
      %p216 = pneg %p48
      %p217 = pneg %p45
      %s218 = smul.u32 3, %s19
      %p219 = scmp.lt.s32.totalorder %s218, 5
      %s220 = scalar_select %p219, %s218, 5
      %s221 = smul.addr %s220, 4
      %s222 = scalar_lea.vmem %s1, %s221
      %p223 = pneg %p74
      %p224 = pneg %p71
      %p225 = scmp.lt.s32.totalorder %s20, 0
      %s226 = scalar_select %p225, %s20, 0
      %s227 = smul.addr %s226, 4
      %s228 = scalar_lea.vmem %s2, %s227
      %p229 = pneg %p100
      %p230 = pneg %p97
      %p231 = scmp.lt.s32.totalorder %s20, 0
      %s232 = scalar_select %p231, %s20, 0
      %s233 = scalar_lea.vmem %s3, %s232
      %p234 = pneg %p126
      %p235 = pneg %p123
      %p236 = pneg %p154
      %p237 = pneg %p151
      %s238 = smul.u32 34, %s19
      %p239 = scmp.lt.s32.totalorder %s238, 67
      %s240 = scalar_select %p239, %s238, 67
      %p241 = scmp.lt.s32.totalorder %s20, 0
      %s242 = scalar_select %p241, %s20, 0
      %s243 = sadd.s32 %s242, %s240
      %s244 = smul.addr %s243, 4
      %s245 = scalar_lea.vmem %s4, %s244
      %s246 = smul.u32 34, %s19
      %p247 = scmp.lt.s32.totalorder %s246, 67
      %s248 = scalar_select %p247, %s246, 67
      %s249 = smul.addr %s248, 4
      %s250 = scalar_lea.vmem %s0, %s249
      %s251 = smul.u32 34, %s19
      %s252 = smul.u32 3, %s19
      %p253 = scmp.lt.s32.totalorder %s252, 5
      %s254 = scalar_select %p253, %s252, 5
      %s255 = smul.addr %s254, 4
      %s256 = scalar_lea.vmem %s1, %s255
      %s257 = smul.u32 3, %s19
      %p258 = scmp.lt.s32.totalorder %s20, 0
      %s259 = scalar_select %p258, %s20, 0
      %s260 = smul.addr %s259, 4
      %s261 = scalar_lea.vmem %s2, %s260
      %p262 = scmp.lt.s32.totalorder %s20, 0
      %s263 = scalar_select %p262, %s20, 0
      %s264 = scalar_lea.vmem %s3, %s263
      %s265 = smul.u32 34, %s19
      %p266 = scmp.lt.s32.totalorder %s265, 67
      %s267 = scalar_select %p266, %s265, 67
      %p268 = scmp.lt.s32.totalorder %s20, 0
      %s269 = scalar_select %p268, %s20, 0
      %s270 = sadd.s32 %s269, %s267
      %s271 = smul.addr %s270, 4
      %s272 = scalar_lea.vmem %s4, %s271
      %s273 = smul.u32 34, %s19
      %v275 = vld [vmem:[%s250] sm:$0xf]
      %v276 = vld [vmem:[%s250 + $0x4] sm:$0xf]
      %v277 = vld [vmem:[%s250 + $0x8] sm:$0xf]
      %v278 = vld [vmem:[%s250 + $0xc] sm:$0xf]
      %v279 = vld [vmem:[%s250 + $0x10] sm:$0xf]
      %v280 = vld [vmem:[%s250 + $0x14] sm:$0xf]
      %v281 = vld [vmem:[%s250 + $0x18] sm:$0xf]
      %v282 = vld [vmem:[%s250 + $0x1c] sm:$0xf]
      %v283 = vld [vmem:[%s250 + $0x20] sm:$0xf]
      %v284 = vld [vmem:[%s250 + $0x24] sm:$0xf]
      %v285 = vld [vmem:[%s250 + $0x28] sm:$0xf]
      %v286 = vld [vmem:[%s250 + $0x2c] sm:$0xf]
      %v287 = vld [vmem:[%s250 + $0x30] sm:$0xf]
      %v288 = vld [vmem:[%s250 + $0x34] sm:$0xf]
      %v289 = vld [vmem:[%s250 + $0x38] sm:$0xf]
      %v290 = vld [vmem:[%s250 + $0x3c] sm:$0xf]
      %v291 = vld [vmem:[%s250 + $0x40] sm:$0xf]
      %v292 = vld [vmem:[%s250 + $0x44] sm:$0xf]
      %v293 = vld [vmem:[%s250 + $0x48] sm:$0xf]
      %v294 = vld [vmem:[%s250 + $0x4c] sm:$0xf]
      %v295 = vld [vmem:[%s250 + $0x50] sm:$0xf]
      %v296 = vld [vmem:[%s250 + $0x54] sm:$0xf]
      %v297 = vld [vmem:[%s250 + $0x58] sm:$0xf]
      %v298 = vld [vmem:[%s250 + $0x5c] sm:$0xf]
      %v299 = vld [vmem:[%s250 + $0x60] sm:$0xf]
      %v300 = vld [vmem:[%s250 + $0x64] sm:$0xf]
      %v301 = vld [vmem:[%s250 + $0x68] sm:$0xf]
      %v302 = vld [vmem:[%s250 + $0x6c] sm:$0xf]
      %v303 = vld [vmem:[%s250 + $0x70] sm:$0xf]
      %v304 = vld [vmem:[%s250 + $0x74] sm:$0xf]
      %v305 = vld [vmem:[%s250 + $0x78] sm:$0xf]
      %v306 = vld [vmem:[%s250 + $0x7c] sm:$0xf]
      %v307 = vld [vmem:[%s250 + $0x80] sm:$0xf]
      %v308 = vld [vmem:[%s250 + $0x84] sm:$0xf]
      %vm309 = vcmask 93184
      %310 = vst.msk [vmem:[#allocation2] sm:$0xf] %vm309, %v275
      %311 = vst.msk [vmem:[#allocation2 + $0x4] sm:$0xf] %vm309, %v276
      %312 = vst.msk [vmem:[#allocation2 + $0x8] sm:$0xf] %vm309, %v277
      %313 = vst.msk [vmem:[#allocation2 + $0xc] sm:$0xf] %vm309, %v278
      %314 = vst.msk [vmem:[#allocation2 + $0x10] sm:$0xf] %vm309, %v279
      %315 = vst.msk [vmem:[#allocation2 + $0x14] sm:$0xf] %vm309, %v280
      %316 = vst.msk [vmem:[#allocation2 + $0x18] sm:$0xf] %vm309, %v281
      %317 = vst.msk [vmem:[#allocation2 + $0x1c] sm:$0xf] %vm309, %v282
      %318 = vst.msk [vmem:[#allocation2 + $0x20] sm:$0xf] %vm309, %v283
      %319 = vst.msk [vmem:[#allocation2 + $0x24] sm:$0xf] %vm309, %v284
      %320 = vst.msk [vmem:[#allocation2 + $0x28] sm:$0xf] %vm309, %v285
      %321 = vst.msk [vmem:[#allocation2 + $0x2c] sm:$0xf] %vm309, %v286
      %322 = vst.msk [vmem:[#allocation2 + $0x30] sm:$0xf] %vm309, %v287
      %323 = vst.msk [vmem:[#allocation2 + $0x34] sm:$0xf] %vm309, %v288
      %324 = vst.msk [vmem:[#allocation2 + $0x38] sm:$0xf] %vm309, %v289
      %325 = vst.msk [vmem:[#allocation2 + $0x3c] sm:$0xf] %vm309, %v290
      %326 = vst.msk [vmem:[#allocation2 + $0x40] sm:$0xf] %vm309, %v291
      %327 = vst.msk [vmem:[#allocation2 + $0x44] sm:$0xf] %vm309, %v292
      %328 = vst.msk [vmem:[#allocation2 + $0x48] sm:$0xf] %vm309, %v293
      %329 = vst.msk [vmem:[#allocation2 + $0x4c] sm:$0xf] %vm309, %v294
      %330 = vst.msk [vmem:[#allocation2 + $0x50] sm:$0xf] %vm309, %v295
      %331 = vst.msk [vmem:[#allocation2 + $0x54] sm:$0xf] %vm309, %v296
      %332 = vst.msk [vmem:[#allocation2 + $0x58] sm:$0xf] %vm309, %v297
      %333 = vst.msk [vmem:[#allocation2 + $0x5c] sm:$0xf] %vm309, %v298
      %334 = vst.msk [vmem:[#allocation2 + $0x60] sm:$0xf] %vm309, %v299
      %335 = vst.msk [vmem:[#allocation2 + $0x64] sm:$0xf] %vm309, %v300
      %336 = vst.msk [vmem:[#allocation2 + $0x68] sm:$0xf] %vm309, %v301
      %337 = vst.msk [vmem:[#allocation2 + $0x6c] sm:$0xf] %vm309, %v302
      %338 = vst.msk [vmem:[#allocation2 + $0x70] sm:$0xf] %vm309, %v303
      %339 = vst.msk [vmem:[#allocation2 + $0x74] sm:$0xf] %vm309, %v304
      %340 = vst.msk [vmem:[#allocation2 + $0x78] sm:$0xf] %vm309, %v305
      %341 = vst.msk [vmem:[#allocation2 + $0x7c] sm:$0xf] %vm309, %v306
      %342 = vst.msk [vmem:[#allocation2 + $0x80] sm:$0xf] %vm309, %v307
      %343 = vst.msk [vmem:[#allocation2 + $0x84] sm:$0xf] %vm309, %v308
      %v344 = vld [vmem:[%s256] sm:$0xf]
      %v345 = vld [vmem:[%s256 + $0x4] sm:$0xf]
      %v346 = vld [vmem:[%s256 + $0x8] sm:$0xf]
      %347 = vst.msk [vmem:[#allocation2 + $0x88] sm:$0xf] %vm309, %v344
      %348 = vst.msk [vmem:[#allocation2 + $0x8c] sm:$0xf] %vm309, %v345
      %349 = vst.msk [vmem:[#allocation2 + $0x90] sm:$0xf] %vm309, %v346
      %v350 = vld [vmem:[#allocation2] sm:$0xf]
      %v351 = vld [vmem:[#allocation2 + $0x4] sm:$0xf]
      %v352 = vld [vmem:[#allocation2 + $0x8] sm:$0xf]
      %v353 = vld [vmem:[#allocation2 + $0xc] sm:$0xf]
      %v354 = vld [vmem:[#allocation2 + $0x10] sm:$0xf]
      %v355 = vld [vmem:[#allocation2 + $0x14] sm:$0xf]
      %v356 = vld [vmem:[#allocation2 + $0x18] sm:$0xf]
      %v357 = vld [vmem:[#allocation2 + $0x1c] sm:$0xf]
      %v358 = vld [vmem:[#allocation2 + $0x20] sm:$0xf]
      %v359 = vld [vmem:[#allocation2 + $0x24] sm:$0xf]
      %v360 = vld [vmem:[#allocation2 + $0x28] sm:$0xf]
      %v361 = vld [vmem:[#allocation2 + $0x2c] sm:$0xf]
      %v362 = vld [vmem:[#allocation2 + $0x30] sm:$0xf]
      %v363 = vld [vmem:[#allocation2 + $0x34] sm:$0xf]
      %v364 = vld [vmem:[#allocation2 + $0x38] sm:$0xf]
      %v365 = vld [vmem:[#allocation2 + $0x3c] sm:$0xf]
      %v366 = vld [vmem:[#allocation2 + $0x40] sm:$0xf]
      %v367 = vld [vmem:[#allocation2 + $0x44] sm:$0xf]
      %v368 = vld [vmem:[#allocation2 + $0x48] sm:$0xf]
      %v369 = vld [vmem:[#allocation2 + $0x4c] sm:$0xf]
      %v370 = vld [vmem:[#allocation2 + $0x50] sm:$0xf]
      %v371 = vld [vmem:[#allocation2 + $0x54] sm:$0xf]
      %v372 = vld [vmem:[#allocation2 + $0x58] sm:$0xf]
      %v373 = vld [vmem:[#allocation2 + $0x5c] sm:$0xf]
      %v374 = vld [vmem:[#allocation2 + $0x60] sm:$0xf]
      %v375 = vld [vmem:[#allocation2 + $0x64] sm:$0xf]
      %v376 = vld [vmem:[#allocation2 + $0x68] sm:$0xf]
      %v377 = vld [vmem:[#allocation2 + $0x6c] sm:$0xf]
      %v378 = vld [vmem:[#allocation2 + $0x70] sm:$0xf]
      %v379 = vld [vmem:[#allocation2 + $0x74] sm:$0xf]
      %v380 = vld [vmem:[#allocation2 + $0x78] sm:$0xf]
      %v381 = vld [vmem:[#allocation2 + $0x7c] sm:$0xf]
      %v382 = vld [vmem:[#allocation2 + $0x80] sm:$0xf]
      %v383 = vld [vmem:[#allocation2 + $0x84] sm:$0xf]
      %v384 = vld [vmem:[%s261] sm:$0xf]
      %v385 = vld [vmem:[%s261 + $0x4] sm:$0x3]
      %v386 = vld [vmem:[#allocation2 + $0x88] sm:$0x1]
      %v387 = vld [vmem:[%s261 + $0x4] sm:$0xc]
      %v388 = vld [vmem:[%s261 + $0x8] sm:$0xf]
      %v424 = vunpack.c.l.b16 %v350
      %v425 = vunpack.c.l.b16 %v351
      %v426 = vunpack.c.l.b16 %v352
      %v427 = vunpack.c.l.b16 %v353
      %v428 = vunpack.c.l.b16 %v354
      %v429 = vunpack.c.l.b16 %v355
      %v430 = vunpack.c.l.b16 %v356
      %v431 = vunpack.c.l.b16 %v357
      %v432 = vunpack.c.l.b16 %v358
      %v433 = vunpack.c.l.b16 %v359
      %v434 = vunpack.c.l.b16 %v360
      %v435 = vunpack.c.l.b16 %v361
      %v436 = vunpack.c.l.b16 %v362
      %v437 = vunpack.c.l.b16 %v363
      %v438 = vunpack.c.l.b16 %v364
      %v439 = vunpack.c.l.b16 %v365
      %v440 = vunpack.c.l.b16 %v366
      %v441 = vunpack.c.l.b16 %v367
      %v442 = vunpack.c.l.b16 %v368
      %v443 = vunpack.c.l.b16 %v369
      %v444 = vunpack.c.l.b16 %v370
      %v445 = vunpack.c.l.b16 %v371
      %v446 = vunpack.c.l.b16 %v372
      %v447 = vunpack.c.l.b16 %v373
      %v448 = vunpack.c.l.b16 %v374
      %v449 = vunpack.c.l.b16 %v375
      %v450 = vunpack.c.l.b16 %v376
      %v451 = vunpack.c.l.b16 %v377
      %v452 = vunpack.c.l.b16 %v378
      %v453 = vunpack.c.l.b16 %v379
      %v454 = vunpack.c.l.b16 %v380
      %v455 = vunpack.c.l.b16 %v381
      %v456 = vunpack.c.l.b16 %v382
      %v457 = vunpack.c.l.b16 %v383
      %v458 = vunpack.c.l.b16 %v386
      %v459 = vpack.c.b16 %v425, %v424
      %v460 = vpack.c.b16 %v427, %v426
      %v461 = vpack.c.b16 %v429, %v428
      %v462 = vpack.c.b16 %v431, %v430
      %v463 = vpack.c.b16 %v433, %v432
      %v464 = vpack.c.b16 %v435, %v434
      %v465 = vpack.c.b16 %v437, %v436
      %v466 = vpack.c.b16 %v439, %v438
      %v467 = vpack.c.b16 %v441, %v440
      %v468 = vpack.c.b16 %v443, %v442
      %v469 = vpack.c.b16 %v445, %v444
      %v470 = vpack.c.b16 %v447, %v446
      %v471 = vpack.c.b16 %v449, %v448
      %v472 = vpack.c.b16 %v451, %v450
      %v473 = vpack.c.b16 %v453, %v452
      %v474 = vpack.c.b16 %v455, %v454
      %v475 = vpack.c.b16 %v457, %v456
      %v476 = vpack.c.b16 %v458, %v458
      %vm477 = vsmask.f32 7424
      %v479 = vshrl.u32 %v459, 16
      %v481 = vshll.u32 %v459, 16
      %v483 = vrot.slane %v481, 1
      %v484 = vor.u32 %v479, %v483
      %v486 = vshll.u32 %v460, 16
      %v488 = vrot.slane %v486, 1
      %v489 = vsel %vm477, %v484, %v488
      %v490 = vshrl.u32 %v460, 16
      %v492 = vor.u32 %v490, %v488
      %v494 = vshll.u32 %v461, 16
      %v496 = vrot.slane %v494, 1
      %v497 = vsel %vm477, %v492, %v496
      %v498 = vshrl.u32 %v461, 16
      %v500 = vor.u32 %v498, %v496
      %v502 = vshll.u32 %v462, 16
      %v504 = vrot.slane %v502, 1
      %v505 = vsel %vm477, %v500, %v504
      %v506 = vshrl.u32 %v462, 16
      %v508 = vor.u32 %v506, %v504
      %v510 = vshll.u32 %v463, 16
      %v512 = vrot.slane %v510, 1
      %v513 = vsel %vm477, %v508, %v512
      %v514 = vshrl.u32 %v463, 16
      %v516 = vor.u32 %v514, %v512
      %v518 = vshll.u32 %v464, 16
      %v520 = vrot.slane %v518, 1
      %v521 = vsel %vm477, %v516, %v520
      %v522 = vshrl.u32 %v464, 16
      %v524 = vor.u32 %v522, %v520
      %v526 = vshll.u32 %v465, 16
      %v528 = vrot.slane %v526, 1
      %v529 = vsel %vm477, %v524, %v528
      %v530 = vshrl.u32 %v465, 16
      %v532 = vor.u32 %v530, %v528
      %v534 = vshll.u32 %v466, 16
      %v536 = vrot.slane %v534, 1
      %v537 = vsel %vm477, %v532, %v536
      %v538 = vshrl.u32 %v466, 16
      %v540 = vor.u32 %v538, %v536
      %v542 = vshll.u32 %v467, 16
      %v544 = vrot.slane %v542, 1
      %v545 = vsel %vm477, %v540, %v544
      %v546 = vshrl.u32 %v467, 16
      %v548 = vor.u32 %v546, %v544
      %v550 = vshll.u32 %v468, 16
      %v552 = vrot.slane %v550, 1
      %v553 = vsel %vm477, %v548, %v552
      %v554 = vshrl.u32 %v468, 16
      %v556 = vor.u32 %v554, %v552
      %v558 = vshll.u32 %v469, 16
      %v560 = vrot.slane %v558, 1
      %v561 = vsel %vm477, %v556, %v560
      %v562 = vshrl.u32 %v469, 16
      %v564 = vor.u32 %v562, %v560
      %v566 = vshll.u32 %v470, 16
      %v568 = vrot.slane %v566, 1
      %v569 = vsel %vm477, %v564, %v568
      %v570 = vshrl.u32 %v470, 16
      %v572 = vor.u32 %v570, %v568
      %v574 = vshll.u32 %v471, 16
      %v576 = vrot.slane %v574, 1
      %v577 = vsel %vm477, %v572, %v576
      %v578 = vshrl.u32 %v471, 16
      %v580 = vor.u32 %v578, %v576
      %v582 = vshll.u32 %v472, 16
      %v584 = vrot.slane %v582, 1
      %v585 = vsel %vm477, %v580, %v584
      %v586 = vshrl.u32 %v472, 16
      %v588 = vor.u32 %v586, %v584
      %v590 = vshll.u32 %v473, 16
      %v592 = vrot.slane %v590, 1
      %v593 = vsel %vm477, %v588, %v592
      %v594 = vshrl.u32 %v473, 16
      %v596 = vor.u32 %v594, %v592
      %v598 = vshll.u32 %v474, 16
      %v600 = vrot.slane %v598, 1
      %v601 = vsel %vm477, %v596, %v600
      %v602 = vshrl.u32 %v474, 16
      %v604 = vor.u32 %v602, %v600
      %v606 = vshll.u32 %v475, 16
      %v608 = vrot.slane %v606, 1
      %v609 = vsel %vm477, %v604, %v608
      %v610 = vshrl.u32 %v475, 16
      %v612 = vor.u32 %v610, %v608
      %v614 = vshll.u32 %v476, 16
      %v616 = vrot.slane %v614, 1
      %v617 = vsel %vm477, %v612, %v616
      %v620 = vunpack.c.l.b16 %v387
      %v621 = vunpack.c.l.b16 %v388
      %v622 = vpack.c.b16 %v621, %v620
      %v623 = vrot.slane %v622, 2
      %vm624 = vcmask 97280
      %v626 = vsel %vm624, %v489, 0
      %v629 = vsel %vm624, %v497, 0
      %v632 = vsel %vm624, %v505, 0
      %v635 = vsel %vm624, %v513, 0
      %v638 = vsel %vm624, %v521, 0
      %v641 = vsel %vm624, %v529, 0
      %v644 = vsel %vm624, %v537, 0
      %v647 = vsel %vm624, %v545, 0
      %v650 = vsel %vm624, %v553, 0
      %v653 = vsel %vm624, %v561, 0
      %v656 = vsel %vm624, %v569, 0
      %v659 = vsel %vm624, %v577, 0
      %v662 = vsel %vm624, %v585, 0
      %v665 = vsel %vm624, %v593, 0
      %v668 = vsel %vm624, %v601, 0
      %v671 = vsel %vm624, %v609, 0
      %v674 = vsel %vm624, %v617, 0
      %vm676 = vcmask 1045504
      %v678 = vsel %vm676, %v623, 0
      %680 = vmatprep.subr.bf16.mxu0 0
      %681 = vmatpush1.bf16.msra.mxu0 %v678
      %682 = vmatprep.subr.bf16.mxu0 0
      %683 = vmatpush1.bf16.msra.mxu0 0
      %684 = vmatprep.subr.bf16.mxu0 0
      %685 = vmatpush1.bf16.msra.mxu0 0
      %686 = vmatprep.subr.bf16.mxu0 0
      %687 = vmatpush1.bf16.msra.mxu0 0
      %688 = vmatprep.subr.bf16.mxu0 0
      %689 = vmatpush1.bf16.msra.mxu0 0
      %690 = vmatprep.subr.bf16.mxu0 0
      %691 = vmatpush1.bf16.msra.mxu0 0
      %692 = vmatprep.subr.bf16.mxu0 0
      %693 = vmatpush1.bf16.msra.mxu0 0
      %694 = vmatprep.subr.bf16.mxu0 0
      %695 = vmatpush1.bf16.msra.mxu0 0
      %696 = vmatprep.subr.bf16.mxu0 0
      %697 = vmatpush1.bf16.msra.mxu0 0
      %698 = vmatprep.subr.bf16.mxu0 0
      %699 = vmatpush1.bf16.msra.mxu0 0
      %700 = vmatprep.subr.bf16.mxu0 0
      %701 = vmatpush1.bf16.msra.mxu0 0
      %702 = vmatprep.subr.bf16.mxu0 0
      %703 = vmatpush1.bf16.msra.mxu0 0
      %704 = vmatprep.subr.bf16.mxu0 0
      %705 = vmatpush1.bf16.msra.mxu0 0
      %706 = vmatprep.subr.bf16.mxu0 0
      %707 = vmatpush1.bf16.msra.mxu0 0
      %708 = vmatprep.subr.bf16.mxu0 0
      %709 = vmatpush1.bf16.msra.mxu0 0
      %710 = vmatprep.subr.bf16.mxu0 0
      %711 = vmatpush1.bf16.msra.mxu0 0
      %712 = vmatprep.mubr.bf16.mxu0 0
      %713 = vmatmul.mubr.bf16.gmra.mrb[0].mxu0 %v626
      %v714 = vpop.f32.mrb[0].mxu0
      %v715 = vadd.f32 0.0, %v714
      %v716 = vpop.f32.mrb[0].mxu0
      %v717 = vpop.f32.mrb[0].mxu0
      %v718 = vadd.f32 0.0, %v717
      %v719 = vpop.f32.mrb[0].mxu0
      %720 = vmatprep.mubr.bf16.mxu0 0
      %721 = vmatmul.mubr.bf16.gmra.mrb[0].mxu0 %v629
      %v722 = vpop.f32.mrb[0].mxu0
      %v723 = vadd.f32 0.0, %v722
      %v724 = vpop.f32.mrb[0].mxu0
      %v725 = vpop.f32.mrb[0].mxu0
      %v726 = vadd.f32 0.0, %v725
      %v727 = vpop.f32.mrb[0].mxu0
      %728 = vmatprep.mubr.bf16.mxu0 0
      %729 = vmatmul.mubr.bf16.gmra.mrb[0].mxu0 %v632
      %v730 = vpop.f32.mrb[0].mxu0
      %v731 = vadd.f32 0.0, %v730
      %v732 = vpop.f32.mrb[0].mxu0
      %v733 = vpop.f32.mrb[0].mxu0
      %v734 = vadd.f32 0.0, %v733
      %v735 = vpop.f32.mrb[0].mxu0
      %736 = vmatprep.mubr.bf16.mxu0 0
      %737 = vmatmul.mubr.bf16.gmra.mrb[0].mxu0 %v635
      %v738 = vpop.f32.mrb[0].mxu0
      %v739 = vadd.f32 0.0, %v738
      %v740 = vpop.f32.mrb[0].mxu0
      %v741 = vpop.f32.mrb[0].mxu0
      %v742 = vadd.f32 0.0, %v741
      %v743 = vpop.f32.mrb[0].mxu0
      %744 = vmatprep.mubr.bf16.mxu0 0
      %745 = vmatmul.mubr.bf16.gmra.mrb[0].mxu0 %v638
      %v746 = vpop.f32.mrb[0].mxu0
      %v747 = vadd.f32 0.0, %v746
      %v748 = vpop.f32.mrb[0].mxu0
      %v749 = vpop.f32.mrb[0].mxu0
      %v750 = vadd.f32 0.0, %v749
      %v751 = vpop.f32.mrb[0].mxu0
      %752 = vmatprep.mubr.bf16.mxu0 0
      %753 = vmatmul.mubr.bf16.gmra.mrb[0].mxu0 %v641
      %v754 = vpop.f32.mrb[0].mxu0
      %v755 = vadd.f32 0.0, %v754
      %v756 = vpop.f32.mrb[0].mxu0
      %v757 = vpop.f32.mrb[0].mxu0
      %v758 = vadd.f32 0.0, %v757
      %v759 = vpop.f32.mrb[0].mxu0
      %760 = vmatprep.mubr.bf16.mxu0 0
      %761 = vmatmul.mubr.bf16.gmra.mrb[0].mxu0 %v644
      %v762 = vpop.f32.mrb[0].mxu0
      %v763 = vadd.f32 0.0, %v762
      %v764 = vpop.f32.mrb[0].mxu0
      %v765 = vpop.f32.mrb[0].mxu0
      %v766 = vadd.f32 0.0, %v765
      %v767 = vpop.f32.mrb[0].mxu0
      %768 = vmatprep.mubr.bf16.mxu0 0
      %769 = vmatmul.mubr.bf16.gmra.mrb[0].mxu0 %v647
      %v770 = vpop.f32.mrb[0].mxu0
      %v771 = vadd.f32 0.0, %v770
      %v772 = vpop.f32.mrb[0].mxu0
      %v773 = vpop.f32.mrb[0].mxu0
      %v774 = vadd.f32 0.0, %v773
      %v775 = vpop.f32.mrb[0].mxu0
      %776 = vmatprep.mubr.bf16.mxu0 0
      %777 = vmatmul.mubr.bf16.gmra.mrb[0].mxu0 %v650
      %v778 = vpop.f32.mrb[0].mxu0
      %v779 = vadd.f32 0.0, %v778
      %v780 = vpop.f32.mrb[0].mxu0
      %v781 = vpop.f32.mrb[0].mxu0
      %v782 = vadd.f32 0.0, %v781
      %v783 = vpop.f32.mrb[0].mxu0
      %784 = vmatprep.mubr.bf16.mxu0 0
      %785 = vmatmul.mubr.bf16.gmra.mrb[0].mxu0 %v653
      %v786 = vpop.f32.mrb[0].mxu0
      %v787 = vadd.f32 0.0, %v786
      %v788 = vpop.f32.mrb[0].mxu0
      %v789 = vpop.f32.mrb[0].mxu0
      %v790 = vadd.f32 0.0, %v789
      %v791 = vpop.f32.mrb[0].mxu0
      %792 = vmatprep.mubr.bf16.mxu0 0
      %793 = vmatmul.mubr.bf16.gmra.mrb[0].mxu0 %v656
      %v794 = vpop.f32.mrb[0].mxu0
      %v795 = vadd.f32 0.0, %v794
      %v796 = vpop.f32.mrb[0].mxu0
      %v797 = vpop.f32.mrb[0].mxu0
      %v798 = vadd.f32 0.0, %v797
      %v799 = vpop.f32.mrb[0].mxu0
      %800 = vmatprep.mubr.bf16.mxu0 0
      %801 = vmatmul.mubr.bf16.gmra.mrb[0].mxu0 %v659
      %v802 = vpop.f32.mrb[0].mxu0
      %v803 = vadd.f32 0.0, %v802
      %v804 = vpop.f32.mrb[0].mxu0
      %v805 = vpop.f32.mrb[0].mxu0
      %v806 = vadd.f32 0.0, %v805
      %v807 = vpop.f32.mrb[0].mxu0
      %808 = vmatprep.mubr.bf16.mxu0 0
      %809 = vmatmul.mubr.bf16.gmra.mrb[0].mxu0 %v662
      %v810 = vpop.f32.mrb[0].mxu0
      %v811 = vadd.f32 0.0, %v810
      %v812 = vpop.f32.mrb[0].mxu0
      %v813 = vpop.f32.mrb[0].mxu0
      %v814 = vadd.f32 0.0, %v813
      %v815 = vpop.f32.mrb[0].mxu0
      %816 = vmatprep.mubr.bf16.mxu0 0
      %817 = vmatmul.mubr.bf16.gmra.mrb[0].mxu0 %v665
      %v818 = vpop.f32.mrb[0].mxu0
      %v819 = vadd.f32 0.0, %v818
      %v820 = vpop.f32.mrb[0].mxu0
      %v821 = vpop.f32.mrb[0].mxu0
      %v822 = vadd.f32 0.0, %v821
      %v823 = vpop.f32.mrb[0].mxu0
      %824 = vmatprep.mubr.bf16.mxu0 0
      %825 = vmatmul.mubr.bf16.gmra.mrb[0].mxu0 %v668
      %v826 = vpop.f32.mrb[0].mxu0
      %v827 = vadd.f32 0.0, %v826
      %v828 = vpop.f32.mrb[0].mxu0
      %v829 = vpop.f32.mrb[0].mxu0
      %v830 = vadd.f32 0.0, %v829
      %v831 = vpop.f32.mrb[0].mxu0
      %832 = vmatprep.mubr.bf16.mxu0 0
      %833 = vmatmul.mubr.bf16.gmra.mrb[0].mxu0 %v671
      %v834 = vpop.f32.mrb[0].mxu0
      %v835 = vadd.f32 0.0, %v834
      %v836 = vpop.f32.mrb[0].mxu0
      %v837 = vpop.f32.mrb[0].mxu0
      %v838 = vadd.f32 0.0, %v837
      %v839 = vpop.f32.mrb[0].mxu0
      %840 = vmatprep.mubr.bf16.mxu0 0
      %841 = vmatmul.mubr.bf16.gmra.mrb[0].mxu0 %v674
      %v842 = vpop.f32.mrb[0].mxu0
      %v843 = vadd.f32 0.0, %v842
      %v844 = vpop.f32.mrb[0].mxu0
      %v845 = vpop.f32.mrb[0].mxu0
      %v846 = vadd.f32 0.0, %v845
      %v847 = vpop.f32.mrb[0].mxu0
      %848 = vdwg.mxu0
      %v851 = vunpack.c.l.b16 %v384
      %v852 = vunpack.c.l.b16 %v385
      %v853 = vpack.c.b16 %v852, %v851
      %v854 = vsel %vm624, %v459, 0
      %v856 = vsel %vm624, %v460, 0
      %v858 = vsel %vm624, %v461, 0
      %v860 = vsel %vm624, %v462, 0
      %v862 = vsel %vm624, %v463, 0
      %v864 = vsel %vm624, %v464, 0
      %v866 = vsel %vm624, %v465, 0
      %v868 = vsel %vm624, %v466, 0
      %v870 = vsel %vm624, %v467, 0
      %v872 = vsel %vm624, %v468, 0
      %v874 = vsel %vm624, %v469, 0
      %v876 = vsel %vm624, %v470, 0
      %v878 = vsel %vm624, %v471, 0
      %v880 = vsel %vm624, %v472, 0
      %v882 = vsel %vm624, %v473, 0
      %v884 = vsel %vm624, %v474, 0
      %v886 = vsel %vm624, %v475, 0
      %v889 = vsel %vm676, %v853, 0
      %891 = vmatprep.subr.bf16.mxu0 0
      %892 = vmatpush1.bf16.msra.mxu0 %v889
      %893 = vmatprep.subr.bf16.mxu0 0
      %894 = vmatpush1.bf16.msra.mxu0 0
      %895 = vmatprep.subr.bf16.mxu0 0
      %896 = vmatpush1.bf16.msra.mxu0 0
      %897 = vmatprep.subr.bf16.mxu0 0
      %898 = vmatpush1.bf16.msra.mxu0 0
      %899 = vmatprep.subr.bf16.mxu0 0
      %900 = vmatpush1.bf16.msra.mxu0 0
      %901 = vmatprep.subr.bf16.mxu0 0
      %902 = vmatpush1.bf16.msra.mxu0 0
      %903 = vmatprep.subr.bf16.mxu0 0
      %904 = vmatpush1.bf16.msra.mxu0 0
      %905 = vmatprep.subr.bf16.mxu0 0
      %906 = vmatpush1.bf16.msra.mxu0 0
      %907 = vmatprep.subr.bf16.mxu0 0
      %908 = vmatpush1.bf16.msra.mxu0 0
      %909 = vmatprep.subr.bf16.mxu0 0
      %910 = vmatpush1.bf16.msra.mxu0 0
      %911 = vmatprep.subr.bf16.mxu0 0
      %912 = vmatpush1.bf16.msra.mxu0 0
      %913 = vmatprep.subr.bf16.mxu0 0
      %914 = vmatpush1.bf16.msra.mxu0 0
      %915 = vmatprep.subr.bf16.mxu0 0
      %916 = vmatpush1.bf16.msra.mxu0 0
      %917 = vmatprep.subr.bf16.mxu0 0
      %918 = vmatpush1.bf16.msra.mxu0 0
      %919 = vmatprep.subr.bf16.mxu0 0
      %920 = vmatpush1.bf16.msra.mxu0 0
      %921 = vmatprep.subr.bf16.mxu0 0
      %922 = vmatpush1.bf16.msra.mxu0 0
      %923 = vmatprep.mubr.bf16.mxu0 0
      %924 = vmatmul.mubr.bf16.gmra.mrb[0].mxu0 %v854
      %v925 = vpop.f32.mrb[0].mxu0
      %v926 = vadd.f32 %v715, %v925
      %v927 = vpop.f32.mrb[0].mxu0
      %v928 = vpop.f32.mrb[0].mxu0
      %v929 = vadd.f32 %v718, %v928
      %v930 = vpop.f32.mrb[0].mxu0
      %931 = vmatprep.mubr.bf16.mxu0 0
      %932 = vmatmul.mubr.bf16.gmra.mrb[0].mxu0 %v856
      %v933 = vpop.f32.mrb[0].mxu0
      %v934 = vadd.f32 %v723, %v933
      %v935 = vpop.f32.mrb[0].mxu0
      %v936 = vpop.f32.mrb[0].mxu0
      %v937 = vadd.f32 %v726, %v936
      %v938 = vpop.f32.mrb[0].mxu0
      %939 = vmatprep.mubr.bf16.mxu0 0
      %940 = vmatmul.mubr.bf16.gmra.mrb[0].mxu0 %v858
      %v941 = vpop.f32.mrb[0].mxu0
      %v942 = vadd.f32 %v731, %v941
      %v943 = vpop.f32.mrb[0].mxu0
      %v944 = vpop.f32.mrb[0].mxu0
      %v945 = vadd.f32 %v734, %v944
      %v946 = vpop.f32.mrb[0].mxu0
      %947 = vmatprep.mubr.bf16.mxu0 0
      %948 = vmatmul.mubr.bf16.gmra.mrb[0].mxu0 %v860
      %v949 = vpop.f32.mrb[0].mxu0
      %v950 = vadd.f32 %v739, %v949
      %v951 = vpop.f32.mrb[0].mxu0
      %v952 = vpop.f32.mrb[0].mxu0
      %v953 = vadd.f32 %v742, %v952
      %v954 = vpop.f32.mrb[0].mxu0
      %955 = vmatprep.mubr.bf16.mxu0 0
      %956 = vmatmul.mubr.bf16.gmra.mrb[0].mxu0 %v862
      %v957 = vpop.f32.mrb[0].mxu0
      %v958 = vadd.f32 %v747, %v957
      %v959 = vpop.f32.mrb[0].mxu0
      %v960 = vpop.f32.mrb[0].mxu0
      %v961 = vadd.f32 %v750, %v960
      %v962 = vpop.f32.mrb[0].mxu0
      %963 = vmatprep.mubr.bf16.mxu0 0
      %964 = vmatmul.mubr.bf16.gmra.mrb[0].mxu0 %v864
      %v965 = vpop.f32.mrb[0].mxu0
      %v966 = vadd.f32 %v755, %v965
      %v967 = vpop.f32.mrb[0].mxu0
      %v968 = vpop.f32.mrb[0].mxu0
      %v969 = vadd.f32 %v758, %v968
      %v970 = vpop.f32.mrb[0].mxu0
      %971 = vmatprep.mubr.bf16.mxu0 0
      %972 = vmatmul.mubr.bf16.gmra.mrb[0].mxu0 %v866
      %v973 = vpop.f32.mrb[0].mxu0
      %v974 = vadd.f32 %v763, %v973
      %v975 = vpop.f32.mrb[0].mxu0
      %v976 = vpop.f32.mrb[0].mxu0
      %v977 = vadd.f32 %v766, %v976
      %v978 = vpop.f32.mrb[0].mxu0
      %979 = vmatprep.mubr.bf16.mxu0 0
      %980 = vmatmul.mubr.bf16.gmra.mrb[0].mxu0 %v868
      %v981 = vpop.f32.mrb[0].mxu0
      %v982 = vadd.f32 %v771, %v981
      %v983 = vpop.f32.mrb[0].mxu0
      %v984 = vpop.f32.mrb[0].mxu0
      %v985 = vadd.f32 %v774, %v984
      %v986 = vpop.f32.mrb[0].mxu0
      %987 = vmatprep.mubr.bf16.mxu0 0
      %988 = vmatmul.mubr.bf16.gmra.mrb[0].mxu0 %v870
      %v989 = vpop.f32.mrb[0].mxu0
      %v990 = vadd.f32 %v779, %v989
      %v991 = vpop.f32.mrb[0].mxu0
      %v992 = vpop.f32.mrb[0].mxu0
      %v993 = vadd.f32 %v782, %v992
      %v994 = vpop.f32.mrb[0].mxu0
      %995 = vmatprep.mubr.bf16.mxu0 0
      %996 = vmatmul.mubr.bf16.gmra.mrb[0].mxu0 %v872
      %v997 = vpop.f32.mrb[0].mxu0
      %v998 = vadd.f32 %v787, %v997
      %v999 = vpop.f32.mrb[0].mxu0
      %v1000 = vpop.f32.mrb[0].mxu0
      %v1001 = vadd.f32 %v790, %v1000
      %v1002 = vpop.f32.mrb[0].mxu0
      %1003 = vmatprep.mubr.bf16.mxu0 0
      %1004 = vmatmul.mubr.bf16.gmra.mrb[0].mxu0 %v874
      %v1005 = vpop.f32.mrb[0].mxu0
      %v1006 = vadd.f32 %v795, %v1005
      %v1007 = vpop.f32.mrb[0].mxu0
      %v1008 = vpop.f32.mrb[0].mxu0
      %v1009 = vadd.f32 %v798, %v1008
      %v1010 = vpop.f32.mrb[0].mxu0
      %1011 = vmatprep.mubr.bf16.mxu0 0
      %1012 = vmatmul.mubr.bf16.gmra.mrb[0].mxu0 %v876
      %v1013 = vpop.f32.mrb[0].mxu0
      %v1014 = vadd.f32 %v803, %v1013
      %v1015 = vpop.f32.mrb[0].mxu0
      %v1016 = vpop.f32.mrb[0].mxu0
      %v1017 = vadd.f32 %v806, %v1016
      %v1018 = vpop.f32.mrb[0].mxu0
      %1019 = vmatprep.mubr.bf16.mxu0 0
      %1020 = vmatmul.mubr.bf16.gmra.mrb[0].mxu0 %v878
      %v1021 = vpop.f32.mrb[0].mxu0
      %v1022 = vadd.f32 %v811, %v1021
      %v1023 = vpop.f32.mrb[0].mxu0
      %v1024 = vpop.f32.mrb[0].mxu0
      %v1025 = vadd.f32 %v814, %v1024
      %v1026 = vpop.f32.mrb[0].mxu0
      %1027 = vmatprep.mubr.bf16.mxu0 0
      %1028 = vmatmul.mubr.bf16.gmra.mrb[0].mxu0 %v880
      %v1029 = vpop.f32.mrb[0].mxu0
      %v1030 = vadd.f32 %v819, %v1029
      %v1031 = vpop.f32.mrb[0].mxu0
      %v1032 = vpop.f32.mrb[0].mxu0
      %v1033 = vadd.f32 %v822, %v1032
      %v1034 = vpop.f32.mrb[0].mxu0
      %1035 = vmatprep.mubr.bf16.mxu0 0
      %1036 = vmatmul.mubr.bf16.gmra.mrb[0].mxu0 %v882
      %v1037 = vpop.f32.mrb[0].mxu0
      %v1038 = vadd.f32 %v827, %v1037
      %v1039 = vpop.f32.mrb[0].mxu0
      %v1040 = vpop.f32.mrb[0].mxu0
      %v1041 = vadd.f32 %v830, %v1040
      %v1042 = vpop.f32.mrb[0].mxu0
      %1043 = vmatprep.mubr.bf16.mxu0 0
      %1044 = vmatmul.mubr.bf16.gmra.mrb[0].mxu0 %v884
      %v1045 = vpop.f32.mrb[0].mxu0
      %v1046 = vadd.f32 %v835, %v1045
      %v1047 = vpop.f32.mrb[0].mxu0
      %v1048 = vpop.f32.mrb[0].mxu0
      %v1049 = vadd.f32 %v838, %v1048
      %v1050 = vpop.f32.mrb[0].mxu0
      %1051 = vmatprep.mubr.bf16.mxu0 0
      %1052 = vmatmul.mubr.bf16.gmra.mrb[0].mxu0 %v886
      %v1053 = vpop.f32.mrb[0].mxu0
      %v1054 = vadd.f32 %v843, %v1053
      %v1055 = vpop.f32.mrb[0].mxu0
      %v1056 = vpop.f32.mrb[0].mxu0
      %v1057 = vadd.f32 %v846, %v1056
      %v1058 = vpop.f32.mrb[0].mxu0
      %1059 = vdwg.mxu0
      %v1060 = vld [vmem:[#allocation2 + $0x8] sm:$0xf]
      %v1061 = vld [vmem:[#allocation2 + $0xc] sm:$0xf]
      %v1062 = vld [vmem:[#allocation2 + $0x10] sm:$0xf]
      %v1063 = vld [vmem:[#allocation2 + $0x14] sm:$0xf]
      %v1064 = vld [vmem:[#allocation2 + $0x18] sm:$0xf]
      %v1065 = vld [vmem:[#allocation2 + $0x1c] sm:$0xf]
      %v1066 = vld [vmem:[#allocation2 + $0x20] sm:$0xf]
      %v1067 = vld [vmem:[#allocation2 + $0x24] sm:$0xf]
      %v1068 = vld [vmem:[#allocation2 + $0x28] sm:$0xf]
      %v1069 = vld [vmem:[#allocation2 + $0x2c] sm:$0xf]
      %v1070 = vld [vmem:[#allocation2 + $0x30] sm:$0xf]
      %v1071 = vld [vmem:[#allocation2 + $0x34] sm:$0xf]
      %v1072 = vld [vmem:[#allocation2 + $0x38] sm:$0xf]
      %v1073 = vld [vmem:[#allocation2 + $0x3c] sm:$0xf]
      %v1074 = vld [vmem:[#allocation2 + $0x40] sm:$0xf]
      %v1075 = vld [vmem:[#allocation2 + $0x44] sm:$0xf]
      %v1076 = vld [vmem:[#allocation2 + $0x48] sm:$0xf]
      %v1077 = vld [vmem:[#allocation2 + $0x4c] sm:$0xf]
      %v1078 = vld [vmem:[#allocation2 + $0x50] sm:$0xf]
      %v1079 = vld [vmem:[#allocation2 + $0x54] sm:$0xf]
      %v1080 = vld [vmem:[#allocation2 + $0x58] sm:$0xf]
      %v1081 = vld [vmem:[#allocation2 + $0x5c] sm:$0xf]
      %v1082 = vld [vmem:[#allocation2 + $0x60] sm:$0xf]
      %v1083 = vld [vmem:[#allocation2 + $0x64] sm:$0xf]
      %v1084 = vld [vmem:[#allocation2 + $0x68] sm:$0xf]
      %v1085 = vld [vmem:[#allocation2 + $0x6c] sm:$0xf]
      %v1086 = vld [vmem:[#allocation2 + $0x70] sm:$0xf]
      %v1087 = vld [vmem:[#allocation2 + $0x74] sm:$0xf]
      %v1088 = vld [vmem:[#allocation2 + $0x78] sm:$0xf]
      %v1089 = vld [vmem:[#allocation2 + $0x7c] sm:$0xf]
      %v1090 = vld [vmem:[#allocation2 + $0x80] sm:$0xf]
      %v1091 = vld [vmem:[#allocation2 + $0x84] sm:$0xf]
      %v1092 = vld [vmem:[#allocation2 + $0x88] sm:$0xf]
      %v1093 = vld [vmem:[#allocation2 + $0x8c] sm:$0xf]
      %v1094 = vld [vmem:[#allocation2 + $0x90] sm:$0x1]
      %v1095 = vld [vmem:[%s261 + $0xc] sm:$0xf]
      %v1096 = vld [vmem:[%s261 + $0x10] sm:$0x3]
      %v1132 = vunpack.c.l.b16 %v1060
      %v1133 = vunpack.c.l.b16 %v1061
      %v1134 = vunpack.c.l.b16 %v1062
      %v1135 = vunpack.c.l.b16 %v1063
      %v1136 = vunpack.c.l.b16 %v1064
      %v1137 = vunpack.c.l.b16 %v1065
      %v1138 = vunpack.c.l.b16 %v1066
      %v1139 = vunpack.c.l.b16 %v1067
      %v1140 = vunpack.c.l.b16 %v1068
      %v1141 = vunpack.c.l.b16 %v1069
      %v1142 = vunpack.c.l.b16 %v1070
      %v1143 = vunpack.c.l.b16 %v1071
      %v1144 = vunpack.c.l.b16 %v1072
      %v1145 = vunpack.c.l.b16 %v1073
      %v1146 = vunpack.c.l.b16 %v1074
      %v1147 = vunpack.c.l.b16 %v1075
      %v1148 = vunpack.c.l.b16 %v1076
      %v1149 = vunpack.c.l.b16 %v1077
      %v1150 = vunpack.c.l.b16 %v1078
      %v1151 = vunpack.c.l.b16 %v1079
      %v1152 = vunpack.c.l.b16 %v1080
      %v1153 = vunpack.c.l.b16 %v1081
      %v1154 = vunpack.c.l.b16 %v1082
      %v1155 = vunpack.c.l.b16 %v1083
      %v1156 = vunpack.c.l.b16 %v1084
      %v1157 = vunpack.c.l.b16 %v1085
      %v1158 = vunpack.c.l.b16 %v1086
      %v1159 = vunpack.c.l.b16 %v1087
      %v1160 = vunpack.c.l.b16 %v1088
      %v1161 = vunpack.c.l.b16 %v1089
      %v1162 = vunpack.c.l.b16 %v1090
      %v1163 = vunpack.c.l.b16 %v1091
      %v1164 = vunpack.c.l.b16 %v1092
      %v1165 = vunpack.c.l.b16 %v1093
      %v1166 = vunpack.c.l.b16 %v1094
      %v1167 = vpack.c.b16 %v1133, %v1132
      %v1168 = vpack.c.b16 %v1135, %v1134
      %v1169 = vpack.c.b16 %v1137, %v1136
      %v1170 = vpack.c.b16 %v1139, %v1138
      %v1171 = vpack.c.b16 %v1141, %v1140
      %v1172 = vpack.c.b16 %v1143, %v1142
      %v1173 = vpack.c.b16 %v1145, %v1144
      %v1174 = vpack.c.b16 %v1147, %v1146
      %v1175 = vpack.c.b16 %v1149, %v1148
      %v1176 = vpack.c.b16 %v1151, %v1150
      %v1177 = vpack.c.b16 %v1153, %v1152
      %v1178 = vpack.c.b16 %v1155, %v1154
      %v1179 = vpack.c.b16 %v1157, %v1156
      %v1180 = vpack.c.b16 %v1159, %v1158
      %v1181 = vpack.c.b16 %v1161, %v1160
      %v1182 = vpack.c.b16 %v1163, %v1162
      %v1183 = vpack.c.b16 %v1165, %v1164
      %v1184 = vpack.c.b16 %v1166, %v1166
      %v1186 = vshrl.u32 %v1167, 16
      %v1188 = vshll.u32 %v1167, 16
      %v1190 = vrot.slane %v1188, 1
      %v1191 = vor.u32 %v1186, %v1190
      %v1193 = vshll.u32 %v1168, 16
      %v1195 = vrot.slane %v1193, 1
      %v1196 = vsel %vm477, %v1191, %v1195
      %v1197 = vshrl.u32 %v1168, 16
      %v1199 = vor.u32 %v1197, %v1195
      %v1201 = vshll.u32 %v1169, 16
      %v1203 = vrot.slane %v1201, 1
      %v1204 = vsel %vm477, %v1199, %v1203
      %v1205 = vshrl.u32 %v1169, 16
      %v1207 = vor.u32 %v1205, %v1203
      %v1209 = vshll.u32 %v1170, 16
      %v1211 = vrot.slane %v1209, 1
      %v1212 = vsel %vm477, %v1207, %v1211
      %v1213 = vshrl.u32 %v1170, 16
      %v1215 = vor.u32 %v1213, %v1211
      %v1217 = vshll.u32 %v1171, 16
      %v1219 = vrot.slane %v1217, 1
      %v1220 = vsel %vm477, %v1215, %v1219
      %v1221 = vshrl.u32 %v1171, 16
      %v1223 = vor.u32 %v1221, %v1219
      %v1225 = vshll.u32 %v1172, 16
      %v1227 = vrot.slane %v1225, 1
      %v1228 = vsel %vm477, %v1223, %v1227
      %v1229 = vshrl.u32 %v1172, 16
      %v1231 = vor.u32 %v1229, %v1227
      %v1233 = vshll.u32 %v1173, 16
      %v1235 = vrot.slane %v1233, 1
      %v1236 = vsel %vm477, %v1231, %v1235
      %v1237 = vshrl.u32 %v1173, 16
      %v1239 = vor.u32 %v1237, %v1235
      %v1241 = vshll.u32 %v1174, 16
      %v1243 = vrot.slane %v1241, 1
      %v1244 = vsel %vm477, %v1239, %v1243
      %v1245 = vshrl.u32 %v1174, 16
      %v1247 = vor.u32 %v1245, %v1243
      %v1249 = vshll.u32 %v1175, 16
      %v1251 = vrot.slane %v1249, 1
      %v1252 = vsel %vm477, %v1247, %v1251
      %v1253 = vshrl.u32 %v1175, 16
      %v1255 = vor.u32 %v1253, %v1251
      %v1257 = vshll.u32 %v1176, 16
      %v1259 = vrot.slane %v1257, 1
      %v1260 = vsel %vm477, %v1255, %v1259
      %v1261 = vshrl.u32 %v1176, 16
      %v1263 = vor.u32 %v1261, %v1259
      %v1265 = vshll.u32 %v1177, 16
      %v1267 = vrot.slane %v1265, 1
      %v1268 = vsel %vm477, %v1263, %v1267
      %v1269 = vshrl.u32 %v1177, 16
      %v1271 = vor.u32 %v1269, %v1267
      %v1273 = vshll.u32 %v1178, 16
      %v1275 = vrot.slane %v1273, 1
      %v1276 = vsel %vm477, %v1271, %v1275
      %v1277 = vshrl.u32 %v1178, 16
      %v1279 = vor.u32 %v1277, %v1275
      %v1281 = vshll.u32 %v1179, 16
      %v1283 = vrot.slane %v1281, 1
      %v1284 = vsel %vm477, %v1279, %v1283
      %v1285 = vshrl.u32 %v1179, 16
      %v1287 = vor.u32 %v1285, %v1283
      %v1289 = vshll.u32 %v1180, 16
      %v1291 = vrot.slane %v1289, 1
      %v1292 = vsel %vm477, %v1287, %v1291
      %v1293 = vshrl.u32 %v1180, 16
      %v1295 = vor.u32 %v1293, %v1291
      %v1297 = vshll.u32 %v1181, 16
      %v1299 = vrot.slane %v1297, 1
      %v1300 = vsel %vm477, %v1295, %v1299
      %v1301 = vshrl.u32 %v1181, 16
      %v1303 = vor.u32 %v1301, %v1299
      %v1305 = vshll.u32 %v1182, 16
      %v1307 = vrot.slane %v1305, 1
      %v1308 = vsel %vm477, %v1303, %v1307
      %v1309 = vshrl.u32 %v1182, 16
      %v1311 = vor.u32 %v1309, %v1307
      %v1313 = vshll.u32 %v1183, 16
      %v1315 = vrot.slane %v1313, 1
      %v1316 = vsel %vm477, %v1311, %v1315
      %v1317 = vshrl.u32 %v1183, 16
      %v1319 = vor.u32 %v1317, %v1315
      %v1321 = vshll.u32 %v1184, 16
      %v1323 = vrot.slane %v1321, 1
      %v1324 = vsel %vm477, %v1319, %v1323
      %v1327 = vunpack.c.l.b16 %v1095
      %v1328 = vunpack.c.l.b16 %v1096
      %v1329 = vpack.c.b16 %v1328, %v1327
      %v1331 = vsel %vm624, %v1196, 0
      %v1334 = vsel %vm624, %v1204, 0
      %v1337 = vsel %vm624, %v1212, 0
      %v1340 = vsel %vm624, %v1220, 0
      %v1343 = vsel %vm624, %v1228, 0
      %v1346 = vsel %vm624, %v1236, 0
      %v1349 = vsel %vm624, %v1244, 0
      %v1352 = vsel %vm624, %v1252, 0
      %v1355 = vsel %vm624, %v1260, 0
      %v1358 = vsel %vm624, %v1268, 0
      %v1361 = vsel %vm624, %v1276, 0
      %v1364 = vsel %vm624, %v1284, 0
      %v1367 = vsel %vm624, %v1292, 0
      %v1370 = vsel %vm624, %v1300, 0
      %v1373 = vsel %vm624, %v1308, 0
      %v1376 = vsel %vm624, %v1316, 0
      %v1379 = vsel %vm624, %v1324, 0
      %v1382 = vsel %vm676, %v1329, 0
      %1384 = vmatprep.subr.bf16.mxu0 0
      %1385 = vmatpush1.bf16.msra.mxu0 %v1382
      %1386 = vmatprep.subr.bf16.mxu0 0
      %1387 = vmatpush1.bf16.msra.mxu0 0
      %1388 = vmatprep.subr.bf16.mxu0 0
      %1389 = vmatpush1.bf16.msra.mxu0 0
      %1390 = vmatprep.subr.bf16.mxu0 0
      %1391 = vmatpush1.bf16.msra.mxu0 0
      %1392 = vmatprep.subr.bf16.mxu0 0
      %1393 = vmatpush1.bf16.msra.mxu0 0
      %1394 = vmatprep.subr.bf16.mxu0 0
      %1395 = vmatpush1.bf16.msra.mxu0 0
      %1396 = vmatprep.subr.bf16.mxu0 0
      %1397 = vmatpush1.bf16.msra.mxu0 0
      %1398 = vmatprep.subr.bf16.mxu0 0
      %1399 = vmatpush1.bf16.msra.mxu0 0
      %1400 = vmatprep.subr.bf16.mxu0 0
      %1401 = vmatpush1.bf16.msra.mxu0 0
      %1402 = vmatprep.subr.bf16.mxu0 0
      %1403 = vmatpush1.bf16.msra.mxu0 0
      %1404 = vmatprep.subr.bf16.mxu0 0
      %1405 = vmatpush1.bf16.msra.mxu0 0
      %1406 = vmatprep.subr.bf16.mxu0 0
      %1407 = vmatpush1.bf16.msra.mxu0 0
      %1408 = vmatprep.subr.bf16.mxu0 0
      %1409 = vmatpush1.bf16.msra.mxu0 0
      %1410 = vmatprep.subr.bf16.mxu0 0
      %1411 = vmatpush1.bf16.msra.mxu0 0
      %1412 = vmatprep.subr.bf16.mxu0 0
      %1413 = vmatpush1.bf16.msra.mxu0 0
      %1414 = vmatprep.subr.bf16.mxu0 0
      %1415 = vmatpush1.bf16.msra.mxu0 0
      %1416 = vmatprep.mubr.bf16.mxu0 0
      %1417 = vmatmul.mubr.bf16.gmra.mrb[0].mxu0 %v1331
      %v1418 = vpop.f32.mrb[0].mxu0
      %v1419 = vadd.f32 0.0, %v1418
      %v1420 = vpop.f32.mrb[0].mxu0
      %v1421 = vpop.f32.mrb[0].mxu0
      %v1422 = vadd.f32 0.0, %v1421
      %v1423 = vpop.f32.mrb[0].mxu0
      %1424 = vmatprep.mubr.bf16.mxu0 0
      %1425 = vmatmul.mubr.bf16.gmra.mrb[0].mxu0 %v1334
      %v1426 = vpop.f32.mrb[0].mxu0
      %v1427 = vadd.f32 0.0, %v1426
      %v1428 = vpop.f32.mrb[0].mxu0
      %v1429 = vpop.f32.mrb[0].mxu0
      %v1430 = vadd.f32 0.0, %v1429
      %v1431 = vpop.f32.mrb[0].mxu0
      %1432 = vmatprep.mubr.bf16.mxu0 0
      %1433 = vmatmul.mubr.bf16.gmra.mrb[0].mxu0 %v1337
      %v1434 = vpop.f32.mrb[0].mxu0
      %v1435 = vadd.f32 0.0, %v1434
      %v1436 = vpop.f32.mrb[0].mxu0
      %v1437 = vpop.f32.mrb[0].mxu0
      %v1438 = vadd.f32 0.0, %v1437
      %v1439 = vpop.f32.mrb[0].mxu0
      %1440 = vmatprep.mubr.bf16.mxu0 0
      %1441 = vmatmul.mubr.bf16.gmra.mrb[0].mxu0 %v1340
      %v1442 = vpop.f32.mrb[0].mxu0
      %v1443 = vadd.f32 0.0, %v1442
      %v1444 = vpop.f32.mrb[0].mxu0
      %v1445 = vpop.f32.mrb[0].mxu0
      %v1446 = vadd.f32 0.0, %v1445
      %v1447 = vpop.f32.mrb[0].mxu0
      %1448 = vmatprep.mubr.bf16.mxu0 0
      %1449 = vmatmul.mubr.bf16.gmra.mrb[0].mxu0 %v1343
      %v1450 = vpop.f32.mrb[0].mxu0
      %v1451 = vadd.f32 0.0, %v1450
      %v1452 = vpop.f32.mrb[0].mxu0
      %v1453 = vpop.f32.mrb[0].mxu0
      %v1454 = vadd.f32 0.0, %v1453
      %v1455 = vpop.f32.mrb[0].mxu0
      %1456 = vmatprep.mubr.bf16.mxu0 0
      %1457 = vmatmul.mubr.bf16.gmra.mrb[0].mxu0 %v1346
      %v1458 = vpop.f32.mrb[0].mxu0
      %v1459 = vadd.f32 0.0, %v1458
      %v1460 = vpop.f32.mrb[0].mxu0
      %v1461 = vpop.f32.mrb[0].mxu0
      %v1462 = vadd.f32 0.0, %v1461
      %v1463 = vpop.f32.mrb[0].mxu0
      %1464 = vmatprep.mubr.bf16.mxu0 0
      %1465 = vmatmul.mubr.bf16.gmra.mrb[0].mxu0 %v1349
      %v1466 = vpop.f32.mrb[0].mxu0
      %v1467 = vadd.f32 0.0, %v1466
      %v1468 = vpop.f32.mrb[0].mxu0
      %v1469 = vpop.f32.mrb[0].mxu0
      %v1470 = vadd.f32 0.0, %v1469
      %v1471 = vpop.f32.mrb[0].mxu0
      %1472 = vmatprep.mubr.bf16.mxu0 0
      %1473 = vmatmul.mubr.bf16.gmra.mrb[0].mxu0 %v1352
      %v1474 = vpop.f32.mrb[0].mxu0
      %v1475 = vadd.f32 0.0, %v1474
      %v1476 = vpop.f32.mrb[0].mxu0
      %v1477 = vpop.f32.mrb[0].mxu0
      %v1478 = vadd.f32 0.0, %v1477
      %v1479 = vpop.f32.mrb[0].mxu0
      %1480 = vmatprep.mubr.bf16.mxu0 0
      %1481 = vmatmul.mubr.bf16.gmra.mrb[0].mxu0 %v1355
      %v1482 = vpop.f32.mrb[0].mxu0
      %v1483 = vadd.f32 0.0, %v1482
      %v1484 = vpop.f32.mrb[0].mxu0
      %v1485 = vpop.f32.mrb[0].mxu0
      %v1486 = vadd.f32 0.0, %v1485
      %v1487 = vpop.f32.mrb[0].mxu0
      %1488 = vmatprep.mubr.bf16.mxu0 0
      %1489 = vmatmul.mubr.bf16.gmra.mrb[0].mxu0 %v1358
      %v1490 = vpop.f32.mrb[0].mxu0
      %v1491 = vadd.f32 0.0, %v1490
      %v1492 = vpop.f32.mrb[0].mxu0
      %v1493 = vpop.f32.mrb[0].mxu0
      %v1494 = vadd.f32 0.0, %v1493
      %v1495 = vpop.f32.mrb[0].mxu0
      %1496 = vmatprep.mubr.bf16.mxu0 0
      %1497 = vmatmul.mubr.bf16.gmra.mrb[0].mxu0 %v1361
      %v1498 = vpop.f32.mrb[0].mxu0
      %v1499 = vadd.f32 0.0, %v1498
      %v1500 = vpop.f32.mrb[0].mxu0
      %v1501 = vpop.f32.mrb[0].mxu0
      %v1502 = vadd.f32 0.0, %v1501
      %v1503 = vpop.f32.mrb[0].mxu0
      %1504 = vmatprep.mubr.bf16.mxu0 0
      %1505 = vmatmul.mubr.bf16.gmra.mrb[0].mxu0 %v1364
      %v1506 = vpop.f32.mrb[0].mxu0
      %v1507 = vadd.f32 0.0, %v1506
      %v1508 = vpop.f32.mrb[0].mxu0
      %v1509 = vpop.f32.mrb[0].mxu0
      %v1510 = vadd.f32 0.0, %v1509
      %v1511 = vpop.f32.mrb[0].mxu0
      %1512 = vmatprep.mubr.bf16.mxu0 0
      %1513 = vmatmul.mubr.bf16.gmra.mrb[0].mxu0 %v1367
      %v1514 = vpop.f32.mrb[0].mxu0
      %v1515 = vadd.f32 0.0, %v1514
      %v1516 = vpop.f32.mrb[0].mxu0
      %v1517 = vpop.f32.mrb[0].mxu0
      %v1518 = vadd.f32 0.0, %v1517
      %v1519 = vpop.f32.mrb[0].mxu0
      %1520 = vmatprep.mubr.bf16.mxu0 0
      %1521 = vmatmul.mubr.bf16.gmra.mrb[0].mxu0 %v1370
      %v1522 = vpop.f32.mrb[0].mxu0
      %v1523 = vadd.f32 0.0, %v1522
      %v1524 = vpop.f32.mrb[0].mxu0
      %v1525 = vpop.f32.mrb[0].mxu0
      %v1526 = vadd.f32 0.0, %v1525
      %v1527 = vpop.f32.mrb[0].mxu0
      %1528 = vmatprep.mubr.bf16.mxu0 0
      %1529 = vmatmul.mubr.bf16.gmra.mrb[0].mxu0 %v1373
      %v1530 = vpop.f32.mrb[0].mxu0
      %v1531 = vadd.f32 0.0, %v1530
      %v1532 = vpop.f32.mrb[0].mxu0
      %v1533 = vpop.f32.mrb[0].mxu0
      %v1534 = vadd.f32 0.0, %v1533
      %v1535 = vpop.f32.mrb[0].mxu0
      %1536 = vmatprep.mubr.bf16.mxu0 0
      %1537 = vmatmul.mubr.bf16.gmra.mrb[0].mxu0 %v1376
      %v1538 = vpop.f32.mrb[0].mxu0
      %v1539 = vadd.f32 0.0, %v1538
      %v1540 = vpop.f32.mrb[0].mxu0
      %v1541 = vpop.f32.mrb[0].mxu0
      %v1542 = vadd.f32 0.0, %v1541
      %v1543 = vpop.f32.mrb[0].mxu0
      %1544 = vmatprep.mubr.bf16.mxu0 0
      %1545 = vmatmul.mubr.bf16.gmra.mrb[0].mxu0 %v1379
      %v1546 = vpop.f32.mrb[0].mxu0
      %v1547 = vadd.f32 0.0, %v1546
      %v1548 = vpop.f32.mrb[0].mxu0
      %v1549 = vpop.f32.mrb[0].mxu0
      %v1550 = vadd.f32 0.0, %v1549
      %v1551 = vpop.f32.mrb[0].mxu0
      %1552 = vdwg.mxu0
      %v1553 = vadd.f32 %v926, %v1419
      %v1554 = vadd.f32 %v929, %v1422
      %v1555 = vadd.f32 %v934, %v1427
      %v1556 = vadd.f32 %v937, %v1430
      %v1557 = vadd.f32 %v942, %v1435
      %v1558 = vadd.f32 %v945, %v1438
      %v1559 = vadd.f32 %v950, %v1443
      %v1560 = vadd.f32 %v953, %v1446
      %v1561 = vadd.f32 %v958, %v1451
      %v1562 = vadd.f32 %v961, %v1454
      %v1563 = vadd.f32 %v966, %v1459
      %v1564 = vadd.f32 %v969, %v1462
      %v1565 = vadd.f32 %v974, %v1467
      %v1566 = vadd.f32 %v977, %v1470
      %v1567 = vadd.f32 %v982, %v1475
      %v1568 = vadd.f32 %v985, %v1478
      %v1569 = vadd.f32 %v990, %v1483
      %v1570 = vadd.f32 %v993, %v1486
      %v1571 = vadd.f32 %v998, %v1491
      %v1572 = vadd.f32 %v1001, %v1494
      %v1573 = vadd.f32 %v1006, %v1499
      %v1574 = vadd.f32 %v1009, %v1502
      %v1575 = vadd.f32 %v1014, %v1507
      %v1576 = vadd.f32 %v1017, %v1510
      %v1577 = vadd.f32 %v1022, %v1515
      %v1578 = vadd.f32 %v1025, %v1518
      %v1579 = vadd.f32 %v1030, %v1523
      %v1580 = vadd.f32 %v1033, %v1526
      %v1581 = vadd.f32 %v1038, %v1531
      %v1582 = vadd.f32 %v1041, %v1534
      %v1583 = vadd.f32 %v1046, %v1539
      %v1584 = vadd.f32 %v1049, %v1542
      %v1585 = vadd.f32 %v1054, %v1547
      %v1586 = vadd.f32 %v1057, %v1550
      %v1587 = vld [vmem:[#allocation2 + $0x8] sm:$0xe]
      %v1588 = vld [vmem:[%s261 + $0x10] sm:$0xc]
      %v1589 = vld [vmem:[%s261 + $0x14] sm:$0xf]
      %v1591 = vunpack.c.l.b16 %v1587
      %v1592 = vpack.c.b16 %v1133, %v1591
      %vm1593 = vcmask 1046528
      %v1594 = vrot.slane %v1592, 1
      %v1595 = vrot.slane %v1168, 1
      %v1596 = vsel %vm1593, %v1594, %v1595
      %v1597 = vrot.slane %v1169, 1
      %v1598 = vsel %vm1593, %v1595, %v1597
      %v1599 = vrot.slane %v1170, 1
      %v1600 = vsel %vm1593, %v1597, %v1599
      %v1601 = vrot.slane %v1171, 1
      %v1602 = vsel %vm1593, %v1599, %v1601
      %v1603 = vrot.slane %v1172, 1
      %v1604 = vsel %vm1593, %v1601, %v1603
      %v1605 = vrot.slane %v1173, 1
      %v1606 = vsel %vm1593, %v1603, %v1605
      %v1607 = vrot.slane %v1174, 1
      %v1608 = vsel %vm1593, %v1605, %v1607
      %v1609 = vrot.slane %v1175, 1
      %v1610 = vsel %vm1593, %v1607, %v1609
      %v1611 = vrot.slane %v1176, 1
      %v1612 = vsel %vm1593, %v1609, %v1611
      %v1613 = vrot.slane %v1177, 1
      %v1614 = vsel %vm1593, %v1611, %v1613
      %v1615 = vrot.slane %v1178, 1
      %v1616 = vsel %vm1593, %v1613, %v1615
      %v1617 = vrot.slane %v1179, 1
      %v1618 = vsel %vm1593, %v1615, %v1617
      %v1619 = vrot.slane %v1180, 1
      %v1620 = vsel %vm1593, %v1617, %v1619
      %v1621 = vrot.slane %v1181, 1
      %v1622 = vsel %vm1593, %v1619, %v1621
      %v1623 = vrot.slane %v1182, 1
      %v1624 = vsel %vm1593, %v1621, %v1623
      %v1625 = vrot.slane %v1183, 1
      %v1626 = vsel %vm1593, %v1623, %v1625
      %v1627 = vrot.slane %v1184, 1
      %v1628 = vsel %vm1593, %v1625, %v1627
      %v1631 = vunpack.c.l.b16 %v1588
      %v1632 = vunpack.c.l.b16 %v1589
      %v1633 = vpack.c.b16 %v1632, %v1631
      %v1634 = vrot.slane %v1633, 2
      %v1636 = vsel %vm624, %v1596, 0
      %v1639 = vsel %vm624, %v1598, 0
      %v1642 = vsel %vm624, %v1600, 0
      %v1645 = vsel %vm624, %v1602, 0
      %v1648 = vsel %vm624, %v1604, 0
      %v1651 = vsel %vm624, %v1606, 0
      %v1654 = vsel %vm624, %v1608, 0
      %v1657 = vsel %vm624, %v1610, 0
      %v1660 = vsel %vm624, %v1612, 0
      %v1663 = vsel %vm624, %v1614, 0
      %v1666 = vsel %vm624, %v1616, 0
      %v1669 = vsel %vm624, %v1618, 0
      %v1672 = vsel %vm624, %v1620, 0
      %v1675 = vsel %vm624, %v1622, 0
      %v1678 = vsel %vm624, %v1624, 0
      %v1681 = vsel %vm624, %v1626, 0
      %v1684 = vsel %vm624, %v1628, 0
      %v1687 = vsel %vm676, %v1634, 0
      %1689 = vmatprep.subr.bf16.mxu0 0
      %1690 = vmatpush1.bf16.msra.mxu0 %v1687
      %1691 = vmatprep.subr.bf16.mxu0 0
      %1692 = vmatpush1.bf16.msra.mxu0 0
      %1693 = vmatprep.subr.bf16.mxu0 0
      %1694 = vmatpush1.bf16.msra.mxu0 0
      %1695 = vmatprep.subr.bf16.mxu0 0
      %1696 = vmatpush1.bf16.msra.mxu0 0
      %1697 = vmatprep.subr.bf16.mxu0 0
      %1698 = vmatpush1.bf16.msra.mxu0 0
      %1699 = vmatprep.subr.bf16.mxu0 0
      %1700 = vmatpush1.bf16.msra.mxu0 0
      %1701 = vmatprep.subr.bf16.mxu0 0
      %1702 = vmatpush1.bf16.msra.mxu0 0
      %1703 = vmatprep.subr.bf16.mxu0 0
      %1704 = vmatpush1.bf16.msra.mxu0 0
      %1705 = vmatprep.subr.bf16.mxu0 0
      %1706 = vmatpush1.bf16.msra.mxu0 0
      %1707 = vmatprep.subr.bf16.mxu0 0
      %1708 = vmatpush1.bf16.msra.mxu0 0
      %1709 = vmatprep.subr.bf16.mxu0 0
      %1710 = vmatpush1.bf16.msra.mxu0 0
      %1711 = vmatprep.subr.bf16.mxu0 0
      %1712 = vmatpush1.bf16.msra.mxu0 0
      %1713 = vmatprep.subr.bf16.mxu0 0
      %1714 = vmatpush1.bf16.msra.mxu0 0
      %1715 = vmatprep.subr.bf16.mxu0 0
      %1716 = vmatpush1.bf16.msra.mxu0 0
      %1717 = vmatprep.subr.bf16.mxu0 0
      %1718 = vmatpush1.bf16.msra.mxu0 0
      %1719 = vmatprep.subr.bf16.mxu0 0
      %1720 = vmatpush1.bf16.msra.mxu0 0
      %1721 = vmatprep.mubr.bf16.mxu0 0
      %1722 = vmatmul.mubr.bf16.gmra.mrb[0].mxu0 %v1636
      %v1723 = vpop.f32.mrb[0].mxu0
      %v1724 = vadd.f32 0.0, %v1723
      %v1725 = vpop.f32.mrb[0].mxu0
      %v1726 = vpop.f32.mrb[0].mxu0
      %v1727 = vadd.f32 0.0, %v1726
      %v1728 = vpop.f32.mrb[0].mxu0
      %1729 = vmatprep.mubr.bf16.mxu0 0
      %1730 = vmatmul.mubr.bf16.gmra.mrb[0].mxu0 %v1639
      %v1731 = vpop.f32.mrb[0].mxu0
      %v1732 = vadd.f32 0.0, %v1731
      %v1733 = vpop.f32.mrb[0].mxu0
      %v1734 = vpop.f32.mrb[0].mxu0
      %v1735 = vadd.f32 0.0, %v1734
      %v1736 = vpop.f32.mrb[0].mxu0
      %1737 = vmatprep.mubr.bf16.mxu0 0
      %1738 = vmatmul.mubr.bf16.gmra.mrb[0].mxu0 %v1642
      %v1739 = vpop.f32.mrb[0].mxu0
      %v1740 = vadd.f32 0.0, %v1739
      %v1741 = vpop.f32.mrb[0].mxu0
      %v1742 = vpop.f32.mrb[0].mxu0
      %v1743 = vadd.f32 0.0, %v1742
      %v1744 = vpop.f32.mrb[0].mxu0
      %1745 = vmatprep.mubr.bf16.mxu0 0
      %1746 = vmatmul.mubr.bf16.gmra.mrb[0].mxu0 %v1645
      %v1747 = vpop.f32.mrb[0].mxu0
      %v1748 = vadd.f32 0.0, %v1747
      %v1749 = vpop.f32.mrb[0].mxu0
      %v1750 = vpop.f32.mrb[0].mxu0
      %v1751 = vadd.f32 0.0, %v1750
      %v1752 = vpop.f32.mrb[0].mxu0
      %1753 = vmatprep.mubr.bf16.mxu0 0
      %1754 = vmatmul.mubr.bf16.gmra.mrb[0].mxu0 %v1648
      %v1755 = vpop.f32.mrb[0].mxu0
      %v1756 = vadd.f32 0.0, %v1755
      %v1757 = vpop.f32.mrb[0].mxu0
      %v1758 = vpop.f32.mrb[0].mxu0
      %v1759 = vadd.f32 0.0, %v1758
      %v1760 = vpop.f32.mrb[0].mxu0
      %1761 = vmatprep.mubr.bf16.mxu0 0
      %1762 = vmatmul.mubr.bf16.gmra.mrb[0].mxu0 %v1651
      %v1763 = vpop.f32.mrb[0].mxu0
      %v1764 = vadd.f32 0.0, %v1763
      %v1765 = vpop.f32.mrb[0].mxu0
      %v1766 = vpop.f32.mrb[0].mxu0
      %v1767 = vadd.f32 0.0, %v1766
      %v1768 = vpop.f32.mrb[0].mxu0
      %1769 = vmatprep.mubr.bf16.mxu0 0
      %1770 = vmatmul.mubr.bf16.gmra.mrb[0].mxu0 %v1654
      %v1771 = vpop.f32.mrb[0].mxu0
      %v1772 = vadd.f32 0.0, %v1771
      %v1773 = vpop.f32.mrb[0].mxu0
      %v1774 = vpop.f32.mrb[0].mxu0
      %v1775 = vadd.f32 0.0, %v1774
      %v1776 = vpop.f32.mrb[0].mxu0
      %1777 = vmatprep.mubr.bf16.mxu0 0
      %1778 = vmatmul.mubr.bf16.gmra.mrb[0].mxu0 %v1657
      %v1779 = vpop.f32.mrb[0].mxu0
      %v1780 = vadd.f32 0.0, %v1779
      %v1781 = vpop.f32.mrb[0].mxu0
      %v1782 = vpop.f32.mrb[0].mxu0
      %v1783 = vadd.f32 0.0, %v1782
      %v1784 = vpop.f32.mrb[0].mxu0
      %1785 = vmatprep.mubr.bf16.mxu0 0
      %1786 = vmatmul.mubr.bf16.gmra.mrb[0].mxu0 %v1660
      %v1787 = vpop.f32.mrb[0].mxu0
      %v1788 = vadd.f32 0.0, %v1787
      %v1789 = vpop.f32.mrb[0].mxu0
      %v1790 = vpop.f32.mrb[0].mxu0
      %v1791 = vadd.f32 0.0, %v1790
      %v1792 = vpop.f32.mrb[0].mxu0
      %1793 = vmatprep.mubr.bf16.mxu0 0
      %1794 = vmatmul.mubr.bf16.gmra.mrb[0].mxu0 %v1663
      %v1795 = vpop.f32.mrb[0].mxu0
      %v1796 = vadd.f32 0.0, %v1795
      %v1797 = vpop.f32.mrb[0].mxu0
      %v1798 = vpop.f32.mrb[0].mxu0
      %v1799 = vadd.f32 0.0, %v1798
      %v1800 = vpop.f32.mrb[0].mxu0
      %1801 = vmatprep.mubr.bf16.mxu0 0
      %1802 = vmatmul.mubr.bf16.gmra.mrb[0].mxu0 %v1666
      %v1803 = vpop.f32.mrb[0].mxu0
      %v1804 = vadd.f32 0.0, %v1803
      %v1805 = vpop.f32.mrb[0].mxu0
      %v1806 = vpop.f32.mrb[0].mxu0
      %v1807 = vadd.f32 0.0, %v1806
      %v1808 = vpop.f32.mrb[0].mxu0
      %1809 = vmatprep.mubr.bf16.mxu0 0
      %1810 = vmatmul.mubr.bf16.gmra.mrb[0].mxu0 %v1669
      %v1811 = vpop.f32.mrb[0].mxu0
      %v1812 = vadd.f32 0.0, %v1811
      %v1813 = vpop.f32.mrb[0].mxu0
      %v1814 = vpop.f32.mrb[0].mxu0
      %v1815 = vadd.f32 0.0, %v1814
      %v1816 = vpop.f32.mrb[0].mxu0
      %1817 = vmatprep.mubr.bf16.mxu0 0
      %1818 = vmatmul.mubr.bf16.gmra.mrb[0].mxu0 %v1672
      %v1819 = vpop.f32.mrb[0].mxu0
      %v1820 = vadd.f32 0.0, %v1819
      %v1821 = vpop.f32.mrb[0].mxu0
      %v1822 = vpop.f32.mrb[0].mxu0
      %v1823 = vadd.f32 0.0, %v1822
      %v1824 = vpop.f32.mrb[0].mxu0
      %1825 = vmatprep.mubr.bf16.mxu0 0
      %1826 = vmatmul.mubr.bf16.gmra.mrb[0].mxu0 %v1675
      %v1827 = vpop.f32.mrb[0].mxu0
      %v1828 = vadd.f32 0.0, %v1827
      %v1829 = vpop.f32.mrb[0].mxu0
      %v1830 = vpop.f32.mrb[0].mxu0
      %v1831 = vadd.f32 0.0, %v1830
      %v1832 = vpop.f32.mrb[0].mxu0
      %1833 = vmatprep.mubr.bf16.mxu0 0
      %1834 = vmatmul.mubr.bf16.gmra.mrb[0].mxu0 %v1678
      %v1835 = vpop.f32.mrb[0].mxu0
      %v1836 = vadd.f32 0.0, %v1835
      %v1837 = vpop.f32.mrb[0].mxu0
      %v1838 = vpop.f32.mrb[0].mxu0
      %v1839 = vadd.f32 0.0, %v1838
      %v1840 = vpop.f32.mrb[0].mxu0
      %1841 = vmatprep.mubr.bf16.mxu0 0
      %1842 = vmatmul.mubr.bf16.gmra.mrb[0].mxu0 %v1681
      %v1843 = vpop.f32.mrb[0].mxu0
      %v1844 = vadd.f32 0.0, %v1843
      %v1845 = vpop.f32.mrb[0].mxu0
      %v1846 = vpop.f32.mrb[0].mxu0
      %v1847 = vadd.f32 0.0, %v1846
      %v1848 = vpop.f32.mrb[0].mxu0
      %1849 = vmatprep.mubr.bf16.mxu0 0
      %1850 = vmatmul.mubr.bf16.gmra.mrb[0].mxu0 %v1684
      %v1851 = vpop.f32.mrb[0].mxu0
      %v1852 = vadd.f32 0.0, %v1851
      %v1853 = vpop.f32.mrb[0].mxu0
      %v1854 = vpop.f32.mrb[0].mxu0
      %v1855 = vadd.f32 0.0, %v1854
      %v1856 = vpop.f32.mrb[0].mxu0
      %1857 = vdwg.mxu0
      %v1858 = vadd.f32 %v1553, %v1724
      %v1859 = vadd.f32 %v1554, %v1727
      %v1860 = vadd.f32 %v1555, %v1732
      %v1861 = vadd.f32 %v1556, %v1735
      %v1862 = vadd.f32 %v1557, %v1740
      %v1863 = vadd.f32 %v1558, %v1743
      %v1864 = vadd.f32 %v1559, %v1748
      %v1865 = vadd.f32 %v1560, %v1751
      %v1866 = vadd.f32 %v1561, %v1756
      %v1867 = vadd.f32 %v1562, %v1759
      %v1868 = vadd.f32 %v1563, %v1764
      %v1869 = vadd.f32 %v1564, %v1767
      %v1870 = vadd.f32 %v1565, %v1772
      %v1871 = vadd.f32 %v1566, %v1775
      %v1872 = vadd.f32 %v1567, %v1780
      %v1873 = vadd.f32 %v1568, %v1783
      %v1874 = vadd.f32 %v1569, %v1788
      %v1875 = vadd.f32 %v1570, %v1791
      %v1876 = vadd.f32 %v1571, %v1796
      %v1877 = vadd.f32 %v1572, %v1799
      %v1878 = vadd.f32 %v1573, %v1804
      %v1879 = vadd.f32 %v1574, %v1807
      %v1880 = vadd.f32 %v1575, %v1812
      %v1881 = vadd.f32 %v1576, %v1815
      %v1882 = vadd.f32 %v1577, %v1820
      %v1883 = vadd.f32 %v1578, %v1823
      %v1884 = vadd.f32 %v1579, %v1828
      %v1885 = vadd.f32 %v1580, %v1831
      %v1886 = vadd.f32 %v1581, %v1836
      %v1887 = vadd.f32 %v1582, %v1839
      %v1888 = vadd.f32 %v1583, %v1844
      %v1889 = vadd.f32 %v1584, %v1847
      %v1890 = vadd.f32 %v1585, %v1852
      %v1891 = vadd.f32 %v1586, %v1855
      %v1892 = vld [vmem:[%s264] sm:$0x1]
      %v1894 = vlaneseq
      %v1895 = vshrl.u32 %v1894, 7
      %v1896 = vsub.s32 0, %v1895
      %v1897 = vrot.slane %v1892, %v1896
      %v1899 = vadd.f32 %v1858, %v1897
      %v1900 = vadd.f32 %v1859, %v1897
      %v1901 = vadd.f32 %v1860, %v1897
      %v1902 = vadd.f32 %v1861, %v1897
      %v1903 = vadd.f32 %v1862, %v1897
      %v1904 = vadd.f32 %v1863, %v1897
      %v1905 = vadd.f32 %v1864, %v1897
      %v1906 = vadd.f32 %v1865, %v1897
      %v1907 = vadd.f32 %v1866, %v1897
      %v1908 = vadd.f32 %v1867, %v1897
      %v1909 = vadd.f32 %v1868, %v1897
      %v1910 = vadd.f32 %v1869, %v1897
      %v1911 = vadd.f32 %v1870, %v1897
      %v1912 = vadd.f32 %v1871, %v1897
      %v1913 = vadd.f32 %v1872, %v1897
      %v1914 = vadd.f32 %v1873, %v1897
      %v1915 = vadd.f32 %v1874, %v1897
      %v1916 = vadd.f32 %v1875, %v1897
      %v1917 = vadd.f32 %v1876, %v1897
      %v1918 = vadd.f32 %v1877, %v1897
      %v1919 = vadd.f32 %v1878, %v1897
      %v1920 = vadd.f32 %v1879, %v1897
      %v1921 = vadd.f32 %v1880, %v1897
      %v1922 = vadd.f32 %v1881, %v1897
      %v1923 = vadd.f32 %v1882, %v1897
      %v1924 = vadd.f32 %v1883, %v1897
      %v1925 = vadd.f32 %v1884, %v1897
      %v1926 = vadd.f32 %v1885, %v1897
      %v1927 = vadd.f32 %v1886, %v1897
      %v1928 = vadd.f32 %v1887, %v1897
      %v1929 = vadd.f32 %v1888, %v1897
      %v1930 = vadd.f32 %v1889, %v1897
      %v1931 = vadd.f32 %v1890, %v1897
      %v1932 = vadd.f32 %v1891, %v1897
      %v1933 = vpack.c.bf16 %v1900, %v1899
      %v1934 = vpack.c.bf16 %v1902, %v1901
      %v1935 = vpack.c.bf16 %v1904, %v1903
      %v1936 = vpack.c.bf16 %v1906, %v1905
      %v1937 = vpack.c.bf16 %v1908, %v1907
      %v1938 = vpack.c.bf16 %v1910, %v1909
      %v1939 = vpack.c.bf16 %v1912, %v1911
      %v1940 = vpack.c.bf16 %v1914, %v1913
      %v1941 = vpack.c.bf16 %v1916, %v1915
      %v1942 = vpack.c.bf16 %v1918, %v1917
      %v1943 = vpack.c.bf16 %v1920, %v1919
      %v1944 = vpack.c.bf16 %v1922, %v1921
      %v1945 = vpack.c.bf16 %v1924, %v1923
      %v1946 = vpack.c.bf16 %v1926, %v1925
      %v1947 = vpack.c.bf16 %v1928, %v1927
      %v1948 = vpack.c.bf16 %v1930, %v1929
      %v1949 = vpack.c.bf16 %v1932, %v1931
      %v1967 = vunpack.c.l.b16 %v1933
      %v1968 = vunpack.c.h.b16 %v1933
      %v1969 = vunpack.c.l.b16 %v1934
      %v1970 = vunpack.c.h.b16 %v1934
      %v1971 = vunpack.c.l.b16 %v1935
      %v1972 = vunpack.c.h.b16 %v1935
      %v1973 = vunpack.c.l.b16 %v1936
      %v1974 = vunpack.c.h.b16 %v1936
      %v1975 = vunpack.c.l.b16 %v1937
      %v1976 = vunpack.c.h.b16 %v1937
      %v1977 = vunpack.c.l.b16 %v1938
      %v1978 = vunpack.c.h.b16 %v1938
      %v1979 = vunpack.c.l.b16 %v1939
      %v1980 = vunpack.c.h.b16 %v1939
      %v1981 = vunpack.c.l.b16 %v1940
      %v1982 = vunpack.c.h.b16 %v1940
      %v1983 = vunpack.c.l.b16 %v1941
      %v1984 = vunpack.c.h.b16 %v1941
      %v1985 = vunpack.c.l.b16 %v1942
      %v1986 = vunpack.c.h.b16 %v1942
      %v1987 = vunpack.c.l.b16 %v1943
      %v1988 = vunpack.c.h.b16 %v1943
      %v1989 = vunpack.c.l.b16 %v1944
      %v1990 = vunpack.c.h.b16 %v1944
      %v1991 = vunpack.c.l.b16 %v1945
      %v1992 = vunpack.c.h.b16 %v1945
      %v1993 = vunpack.c.l.b16 %v1946
      %v1994 = vunpack.c.h.b16 %v1946
      %v1995 = vunpack.c.l.b16 %v1947
      %v1996 = vunpack.c.h.b16 %v1947
      %v1997 = vunpack.c.l.b16 %v1948
      %v1998 = vunpack.c.h.b16 %v1948
      %v1999 = vunpack.c.l.b16 %v1949
      %v2000 = vunpack.c.h.b16 %v1949
      %v2001 = vpack.c.b16 %v1967, %v1967
      %v2002 = vpack.c.b16 %v1968, %v1968
      %v2003 = vpack.c.b16 %v1969, %v1969
      %v2004 = vpack.c.b16 %v1970, %v1970
      %v2005 = vpack.c.b16 %v1971, %v1971
      %v2006 = vpack.c.b16 %v1972, %v1972
      %v2007 = vpack.c.b16 %v1973, %v1973
      %v2008 = vpack.c.b16 %v1974, %v1974
      %v2009 = vpack.c.b16 %v1975, %v1975
      %v2010 = vpack.c.b16 %v1976, %v1976
      %v2011 = vpack.c.b16 %v1977, %v1977
      %v2012 = vpack.c.b16 %v1978, %v1978
      %v2013 = vpack.c.b16 %v1979, %v1979
      %v2014 = vpack.c.b16 %v1980, %v1980
      %v2015 = vpack.c.b16 %v1981, %v1981
      %v2016 = vpack.c.b16 %v1982, %v1982
      %v2017 = vpack.c.b16 %v1983, %v1983
      %v2018 = vpack.c.b16 %v1984, %v1984
      %v2019 = vpack.c.b16 %v1985, %v1985
      %v2020 = vpack.c.b16 %v1986, %v1986
      %v2021 = vpack.c.b16 %v1987, %v1987
      %v2022 = vpack.c.b16 %v1988, %v1988
      %v2023 = vpack.c.b16 %v1989, %v1989
      %v2024 = vpack.c.b16 %v1990, %v1990
      %v2025 = vpack.c.b16 %v1991, %v1991
      %v2026 = vpack.c.b16 %v1992, %v1992
      %v2027 = vpack.c.b16 %v1993, %v1993
      %v2028 = vpack.c.b16 %v1994, %v1994
      %v2029 = vpack.c.b16 %v1995, %v1995
      %v2030 = vpack.c.b16 %v1996, %v1996
      %v2031 = vpack.c.b16 %v1997, %v1997
      %v2032 = vpack.c.b16 %v1998, %v1998
      %v2033 = vpack.c.b16 %v1999, %v1999
      %v2034 = vpack.c.b16 %v2000, %v2000
      %vm2069 = vcmask 519168
      %2070 = vst.msk [vmem:[%s272] sm:$0xf] %vm2069, %v2001
      %2071 = vst.msk [vmem:[%s272 + $0x4] sm:$0xf] %vm2069, %v2002
      %2072 = vst.msk [vmem:[%s272 + $0x8] sm:$0xf] %vm2069, %v2003
      %2073 = vst.msk [vmem:[%s272 + $0xc] sm:$0xf] %vm2069, %v2004
      %2074 = vst.msk [vmem:[%s272 + $0x10] sm:$0xf] %vm2069, %v2005
      %2075 = vst.msk [vmem:[%s272 + $0x14] sm:$0xf] %vm2069, %v2006
      %2076 = vst.msk [vmem:[%s272 + $0x18] sm:$0xf] %vm2069, %v2007
      %2077 = vst.msk [vmem:[%s272 + $0x1c] sm:$0xf] %vm2069, %v2008
      %2078 = vst.msk [vmem:[%s272 + $0x20] sm:$0xf] %vm2069, %v2009
      %2079 = vst.msk [vmem:[%s272 + $0x24] sm:$0xf] %vm2069, %v2010
      %2080 = vst.msk [vmem:[%s272 + $0x28] sm:$0xf] %vm2069, %v2011
      %2081 = vst.msk [vmem:[%s272 + $0x2c] sm:$0xf] %vm2069, %v2012
      %2082 = vst.msk [vmem:[%s272 + $0x30] sm:$0xf] %vm2069, %v2013
      %2083 = vst.msk [vmem:[%s272 + $0x34] sm:$0xf] %vm2069, %v2014
      %2084 = vst.msk [vmem:[%s272 + $0x38] sm:$0xf] %vm2069, %v2015
      %2085 = vst.msk [vmem:[%s272 + $0x3c] sm:$0xf] %vm2069, %v2016
      %2086 = vst.msk [vmem:[%s272 + $0x40] sm:$0xf] %vm2069, %v2017
      %2087 = vst.msk [vmem:[%s272 + $0x44] sm:$0xf] %vm2069, %v2018
      %2088 = vst.msk [vmem:[%s272 + $0x48] sm:$0xf] %vm2069, %v2019
      %2089 = vst.msk [vmem:[%s272 + $0x4c] sm:$0xf] %vm2069, %v2020
      %2090 = vst.msk [vmem:[%s272 + $0x50] sm:$0xf] %vm2069, %v2021
      %2091 = vst.msk [vmem:[%s272 + $0x54] sm:$0xf] %vm2069, %v2022
      %2092 = vst.msk [vmem:[%s272 + $0x58] sm:$0xf] %vm2069, %v2023
      %2093 = vst.msk [vmem:[%s272 + $0x5c] sm:$0xf] %vm2069, %v2024
      %2094 = vst.msk [vmem:[%s272 + $0x60] sm:$0xf] %vm2069, %v2025
      %2095 = vst.msk [vmem:[%s272 + $0x64] sm:$0xf] %vm2069, %v2026
      %2096 = vst.msk [vmem:[%s272 + $0x68] sm:$0xf] %vm2069, %v2027
      %2097 = vst.msk [vmem:[%s272 + $0x6c] sm:$0xf] %vm2069, %v2028
      %2098 = vst.msk [vmem:[%s272 + $0x70] sm:$0xf] %vm2069, %v2029
      %2099 = vst.msk [vmem:[%s272 + $0x74] sm:$0xf] %vm2069, %v2030
      %2100 = vst.msk [vmem:[%s272 + $0x78] sm:$0xf] %vm2069, %v2031
      %2101 = vst.msk [vmem:[%s272 + $0x7c] sm:$0xf] %vm2069, %v2032
      %2102 = vst.msk [vmem:[%s272 + $0x80] sm:$0xf] %vm2069, %v2033
      %2103 = vst.msk [vmem:[%s272 + $0x84] sm:$0xf] %vm2069, %v2034
      %s2104 = smul.u32 34, %s19
      %p2105 = scmp.lt.s32.totalorder %s2104, 67
      %s2106 = scalar_select %p2105, %s2104, 67
      %p2107 = scmp.lt.s32.totalorder %s20, 0
      %s2108 = scalar_select %p2107, %s20, 0
      %s2109 = sadd.s32 %s2108, %s2106
      %s2110 = smul.addr %s2109, 4
      %s2111 = scalar_lea.vmem %s4, %s2110
      // Predicated region
      $region37: #{tpu_custom_call.1} parent=35 // pred_check
        %p2112 = pneg %p151
      $region38: #{tpu_custom_call.1} parent=35 // pred_check_branch
        %2114 = sbr.rel (%p2112) target = $region40
      $region39: #{tpu_custom_call.1} parent=35 // pred_region
        %s2115 = smul.u32 34, %s19
      $region40: #{tpu_custom_call.1} parent=35 // pred_fallthru
        _
    $region36: #{tpu_custom_call.1} parent=5 // pred_fallthru
      _
    %p2116 = scmp.le.s32.totalorder 2, %s10
    // Predicated region
    $region41: #{tpu_custom_call.1} parent=5 // pred_check
      %p2117 = pneg %p2116
    $region42: #{tpu_custom_call.1} parent=5 // pred_check_branch
      %2119 = sbr.rel (%p2117) target = $region44
    $region43: #{tpu_custom_call.1} parent=5 // pred_region
      %s2120 = ssub.s32 %s10, 2
      // Predicated region
      $region45: #{tpu_custom_call.1} parent=43 // pred_check
        %p2121 = pneg %p157
      $region46: #{tpu_custom_call.1} parent=43 // pred_check_branch
        %2123 = sbr.rel (%p2121) target = $region48
      $region47: #{tpu_custom_call.1} parent=43 // pred_region
        %s2124 = smul.u32 34, %s21
        %p2125 = scmp.lt.s32.totalorder %s2124, 67
        %s2126 = scalar_select %p2125, %s2124, 67
        %p2127 = scmp.lt.s32.totalorder %s22, 0
        %s2128 = scalar_select %p2127, %s22, 0
        %s2129 = sadd.s32 %s2128, %s2126
        %s2130 = smul.addr %s2129, 4
        %s2131 = scalar_lea.vmem %s4, %s2130
      $region48: #{tpu_custom_call.1} parent=43 // pred_fallthru
        _
    $region44: #{tpu_custom_call.1} parent=5 // pred_fallthru
      _
  $region6: #{tpu_custom_call.1} parent=0 // loop_footer
    %s14 = sadd.s32 1, %s10
  $region7: #{tpu_custom_call.1} parent=0 // loop_footer_branch
    %9 = sbr.rel target = $region3
  $region8: #{tpu_custom_call.1} parent=0 // loop_exit
    _

</llo_original>
